<compile_context>
chip_gen: v6e
topology: v6e:2x2x1
jax: 0.10.0
libtpu: 0.0.40
codegen_flags: <defaults>
</compile_context>

<pallas_src>
import math
import functools

import jax
import jax.numpy as jnp
from jax.experimental import pallas as pl
from jax.experimental.pallas import tpu as pltpu


def _layer_norm(y, gamma, beta, eps):
    mu = jnp.mean(y, axis=-1, keepdims=True)
    c = y - mu
    var = jnp.mean(c * c, axis=-1, keepdims=True)
    return c * jax.lax.rsqrt(var + eps) * gamma + beta


def _gelu_tanh(x):
    # tanh-form GELU: single EUP transcendental per element; max abs error vs
    # exact erf-GELU ~1e-3 (well inside the accuracy budget of bf16 matmuls).
    c = math.sqrt(2.0 / math.pi)
    return 0.5 * x * (1.0 + jnp.tanh(c * (x + 0.044715 * x * x * x)))


def _encoder_layer_kernel(
    x_ref, mask_ref,
    wq_ref, bq_ref, wk_ref, bk_ref, wv_ref, bv_ref, wo_ref, bo_ref,
    ln_g_ref, ln_b_ref, w1_ref, b1_ref, w2_ref, b2_ref,
    o_ref,
    k_scr, v_scr, ctx_scr,
    *, heads: int, d_k: int, eps: float):
    qi = pl.program_id(1)
    tq = o_ref.shape[1]                               # query-tile length

    # ---- K / V projections for the WHOLE sequence: once per batch ------------
    # Scratch persists across the (arbitrary) query-tile axis, so later tiles
    # reuse it for free.
    @pl.when(qi == 0)
    def _():
        x_full = x_ref[0].astype(jnp.bfloat16)        # (S, D) bf16 MXU operand
        for h in range(heads):                        # static unroll over heads
            k_h = jnp.dot(x_full, wk_ref[h],
                          preferred_element_type=jnp.float32) + bk_ref[h]
            v_h = jnp.dot(x_full, wv_ref[h],
                          preferred_element_type=jnp.float32) + bv_ref[h]
            k_scr[h] = k_h.astype(jnp.bfloat16)
            v_scr[h] = v_h.astype(jnp.bfloat16)

    # ---- Query tile ----------------------------------------------------------
    q0 = pl.multiple_of(qi * tq, tq)
    x_tile = x_ref[0, pl.ds(q0, tq), :]               # (TQ, D) f32 (residual)
    x_bf = x_tile.astype(jnp.bfloat16)
    neg_mask = (1.0 - mask_ref[0]) * (-1e9)           # (1, S) additive key mask

    # ---- Attention: heads statically unrolled --------------------------------
    # 1/sqrt(d_k) is pre-folded into wq/bq by the wrapper.
    for h in range(heads):
        qh = jnp.dot(x_bf, wq_ref[h],
                     preferred_element_type=jnp.float32) + bq_ref[h]   # (TQ,d_k)
        s = jax.lax.dot_general(qh.astype(jnp.bfloat16), k_scr[h],
                                (((1,), (1,)), ((), ())),
                                preferred_element_type=jnp.float32)    # (TQ, S)
        s = s + neg_mask
        s = s - jnp.max(s, axis=-1, keepdims=True)    # stable softmax (f32)
        e = jnp.exp(s)
        probs = e * pl.reciprocal(jnp.sum(e, axis=-1, keepdims=True), approx=True)
        ctx_h = jnp.dot(probs.astype(jnp.bfloat16), v_scr[h],
                        preferred_element_type=jnp.float32)            # (TQ,d_k)
        ctx_scr[:, h * d_k:(h + 1) * d_k] = ctx_h.astype(jnp.bfloat16)

    # Single full-depth output projection: concat_h(ctx_h) @ Wo.
    attn = jnp.dot(ctx_scr[...], wo_ref[...],
                   preferred_element_type=jnp.float32) + bo_ref[...]   # (TQ, D)

    gamma = ln_g_ref[...]
    beta = ln_b_ref[...]
    inter = _layer_norm(attn + x_tile, gamma, beta, eps)

    # ---- FeedForward: fc1 -> GELU -> fc2, residual + shared LayerNorm --------
    h1 = jnp.dot(inter.astype(jnp.bfloat16), w1_ref[...],
                 preferred_element_type=jnp.float32) + b1_ref[...]     # (TQ, FF)
    h1 = _gelu_tanh(h1)
    ff = jnp.dot(h1.astype(jnp.bfloat16), w2_ref[...],
                 preferred_element_type=jnp.float32) + b2_ref[...]     # (TQ, D)

    o_ref[0] = _layer_norm(ff + inter, gamma, beta, eps)


def encoder_layer(x, mask, params, *, heads: int, eps: float = 1e-5):
    """x: (B, S, D) f32; mask: (B, 1, 1, S); returns (B, S, D) f32."""
    B, S, D = x.shape
    FF = params["w1"].shape[1]
    assert D % heads == 0
    d_k = D // heads

    # Query-tile length: full sequence for small S, 256 rows otherwise.
    TQ = S if S <= 256 else 256
    if S % TQ != 0:
        TQ = S
    n_qt = S // TQ

    mask2 = mask.astype(jnp.float32).reshape(B, 1, S)

    # ---- Parameter prep (wrapper-side, plain XLA) -----------------------------
    scale = 1.0 / math.sqrt(d_k)
    bf16 = jnp.bfloat16

    def per_head(w):                       # (D, D) torch-W^T -> (heads, D, d_k)
        return jnp.transpose(w.reshape(D, heads, d_k), (1, 0, 2))

    wq_h = per_head(params["wq"] * scale).astype(bf16)      # scale folded into Wq
    bq_h = (params["bq"] * scale).reshape(heads, 1, d_k)
    wk_h = per_head(params["wk"]).astype(bf16)
    bk_h = params["bk"].reshape(heads, 1, d_k)
    wv_h = per_head(params["wv"]).astype(bf16)
    bv_h = params["bv"].reshape(heads, 1, d_k)
    wo = params["wo"].astype(bf16)                          # (D, D), used whole
    w1 = params["w1"].astype(bf16)                          # (D, FF)
    w2 = params["w2"].astype(bf16)                          # (FF, D)
    bo, b1, b2 = params["bo"], params["b1"], params["b2"]
    ln_g, ln_b = params["ln_g"], params["ln_b"]

    kernel = functools.partial(_encoder_layer_kernel, heads=heads, d_k=d_k, eps=eps)

    batch_map = lambda b, q: (b, 0, 0)     # per-batch, reused across query tiles
    qtile_map = lambda b, q: (b, q, 0)     # per (batch, query-tile) output block
    shared3 = lambda b, q: (0, 0, 0)       # weights: same block -> VMEM-resident
    shared2 = lambda b, q: (0, 0)

    in_specs = [
        pl.BlockSpec((1, S, D), batch_map),                                   # x
        pl.BlockSpec((1, 1, S), batch_map),                                   # mask
        pl.BlockSpec((heads, D, d_k), shared3), pl.BlockSpec((heads, 1, d_k), shared3),  # wq,bq
        pl.BlockSpec((heads, D, d_k), shared3), pl.BlockSpec((heads, 1, d_k), shared3),  # wk,bk
        pl.BlockSpec((heads, D, d_k), shared3), pl.BlockSpec((heads, 1, d_k), shared3),  # wv,bv
        pl.BlockSpec((D, D), shared2), pl.BlockSpec((1, D), shared2),         # wo, bo
        pl.BlockSpec((1, D), shared2), pl.BlockSpec((1, D), shared2),         # ln_g, ln_b
        pl.BlockSpec((D, FF), shared2), pl.BlockSpec((1, FF), shared2),       # w1, b1
        pl.BlockSpec((FF, D), shared2), pl.BlockSpec((1, D), shared2),        # w2, b2
    ]
    out_specs = pl.BlockSpec((1, TQ, D), qtile_map)

    scratch_shapes = [
        pltpu.VMEM((heads, S, d_k), bf16),     # K (full sequence, per batch)
        pltpu.VMEM((heads, S, d_k), bf16),     # V (full sequence, per batch)
        pltpu.VMEM((TQ, D), bf16),             # concatenated per-head context
    ]

    # Advisory cost estimate so XLA schedules around the fused call correctly.
    flops = B * (6 * S * D * D          # Q/K/V projections
                 + 4 * S * S * D        # scores + context over all heads
                 + 2 * S * D * D        # output projection
                 + 4 * S * D * FF)      # fc1 + fc2
    transcendentals = B * (heads * S * S + S * FF)
    weight_args = (wq_h, bq_h, wk_h, bk_h, wv_h, bv_h, wo, bo,
                   ln_g, ln_b, w1, b1, w2, b2)
    bytes_accessed = int(sum(int(a.nbytes) for a in weight_args)
                         + 2 * int(x.nbytes) + int(mask2.nbytes))
    cost = pl.CostEstimate(flops=int(flops),
                           transcendentals=int(transcendentals),
                           bytes_accessed=bytes_accessed)

    return pl.pallas_call(
        kernel,
        out_shape=jax.ShapeDtypeStruct((B, S, D), jnp.float32),
        grid_spec=pltpu.PrefetchScalarGridSpec(
            num_scalar_prefetch=0,
            grid=(B, n_qt),
            in_specs=in_specs,
            out_specs=out_specs,
            scratch_shapes=scratch_shapes,
        ),
        compiler_params=pltpu.CompilerParams(
            # Batch axis megacore-parallel; query tiles sequential so the K/V
            # scratch computed at q_tile==0 is valid for the later tiles.
            dimension_semantics=("parallel", "arbitrary"),
            # Explicit VMEM budget: above the 16/32 MiB scoped defaults, below
            # v7x's 64 MiB physical. Raise toward 128 MiB on v5e/v6e for
            # production d_model=768 / ffn=3072.
            vmem_limit_bytes=56 * 1024 * 1024,
        ),
        cost_estimate=cost,
    )(x, mask2, *weight_args)


def _reference_encoder_layer(x, mask, p, heads):
    """Pure-jnp reference mirroring the PyTorch EncoderLayer eval path."""
    B, S, D = x.shape
    d_k = D // heads
    hp = jax.lax.Precision.HIGHEST

    def linear(z, w, b):
        return jnp.einsum("bsd,de->bse", z, w, precision=hp) + b

    def split_heads(z):
        return z.reshape(B, S, heads, d_k).transpose(0, 2, 1, 3)

    q = split_heads(linear(x, p["wq"], p["bq"]))
    k = split_heads(linear(x, p["wk"], p["bk"]))
    v = split_heads(linear(x, p["wv"], p["bv"]))
    scores = jnp.einsum("bhqd,bhkd->bhqk", q, k, precision=hp) / math.sqrt(d_k)
    scores = scores + (1.0 - mask.astype(jnp.float32)) * (-1e9)
    w = jax.nn.softmax(scores, axis=-1)
    ctx = jnp.einsum("bhqk,bhkd->bhqd", w, v, precision=hp)
    ctx = ctx.transpose(0, 2, 1, 3).reshape(B, S, D)
    attn = linear(ctx, p["wo"], p["bo"])

    def layer_norm(z):
        mu = z.mean(-1, keepdims=True)
        var = ((z - mu) ** 2).mean(-1, keepdims=True)
        return (z - mu) / jnp.sqrt(var + 1e-5) * p["ln_g"] + p["ln_b"]

    inter = layer_norm(attn + x)
    h = jax.nn.gelu(linear(inter, p["w1"], p["b1"]), approximate=False)
    ff = linear(h, p["w2"], p["b2"])
    return layer_norm(ff + inter)


if __name__ == "__main__":
    B, S, D, HEADS, FF = 2, 8, 32, 4, 128

    key = jax.random.PRNGKey(0)
    ks = jax.random.split(key, 16)

    def nrm(k, shape, scale):
        return scale * jax.random.normal(k, shape, dtype=jnp.float32)

    x = nrm(ks[0], (B, S, D), 1.0)
    mask = jnp.ones((B, 1, 1, S), dtype=jnp.float32)
    mask = mask.at[1, :, :, S - 2:].set(0.0)      # mask the last 2 keys of batch 1

    wsc = 1.0 / math.sqrt(D)
    params = {
        # Linear weights stored (in, out) == torch weight transposed.
        "wq": nrm(ks[1], (D, D), wsc),  "bq": nrm(ks[2], (1, D), 0.02),
        "wk": nrm(ks[3], (D, D), wsc),  "bk": nrm(ks[4], (1, D), 0.02),
        "wv": nrm(ks[5], (D, D), wsc),  "bv": nrm(ks[6], (1, D), 0.02),
        "wo": nrm(ks[7], (D, D), wsc),  "bo": nrm(ks[8], (1, D), 0.02),
        "ln_g": 1.0 + nrm(ks[9], (1, D), 0.1), "ln_b": nrm(ks[10], (1, D), 0.05),
        "w1": nrm(ks[11], (D, FF), wsc),                 "b1": nrm(ks[12], (1, FF), 0.02),
        "w2": nrm(ks[13], (FF, D), 1.0 / math.sqrt(FF)), "b2": nrm(ks[14], (1, D), 0.02),
    }

    out = encoder_layer(x, mask, params, heads=HEADS)
    out = jax.block_until_ready(out)

    assert out.shape == (B, S, D), out.shape
    assert out.dtype == jnp.float32

    ref = _reference_encoder_layer(x, mask, params, HEADS)
    # Tolerance covers bf16 MXU operands and the tanh-form GELU vs the exact
    # erf GELU / float32 XLA reference.
    max_diff = float(jnp.max(jnp.abs(out - ref)))
    assert jnp.allclose(out, ref, atol=2e-2, rtol=2e-2), f"max|diff|={max_diff}"

    print("KERNEL_OK")
</pallas_src>

<mosaic_0001>
module attributes {stable_mosaic.version = 11 : i64} {
  func.func @_encoder_layer_kernel(%arg0: i32, %arg1: i32, %arg2: memref<1x8x32xf32, #tpu.memory_space<vmem>>, %arg3: memref<1x1x8xf32, #tpu.memory_space<vmem>>, %arg4: memref<4x32x8xbf16, #tpu.memory_space<vmem>>, %arg5: memref<4x1x8xf32, #tpu.memory_space<vmem>>, %arg6: memref<4x32x8xbf16, #tpu.memory_space<vmem>>, %arg7: memref<4x1x8xf32, #tpu.memory_space<vmem>>, %arg8: memref<4x32x8xbf16, #tpu.memory_space<vmem>>, %arg9: memref<4x1x8xf32, #tpu.memory_space<vmem>>, %arg10: memref<32x32xbf16, #tpu.memory_space<vmem>>, %arg11: memref<1x32xf32, #tpu.memory_space<vmem>>, %arg12: memref<1x32xf32, #tpu.memory_space<vmem>>, %arg13: memref<1x32xf32, #tpu.memory_space<vmem>>, %arg14: memref<32x128xbf16, #tpu.memory_space<vmem>>, %arg15: memref<1x128xf32, #tpu.memory_space<vmem>>, %arg16: memref<128x32xbf16, #tpu.memory_space<vmem>>, %arg17: memref<1x32xf32, #tpu.memory_space<vmem>>, %arg18: memref<1x8x32xf32, #tpu.memory_space<vmem>>, %arg19: memref<4x8x8xbf16, #tpu.memory_space<vmem>>, %arg20: memref<4x8x8xbf16, #tpu.memory_space<vmem>>, %arg21: memref<8x32xbf16, #tpu.memory_space<vmem>>) attributes {dimension_semantics = [#tpu.dimension_semantics<parallel>, #tpu.dimension_semantics<arbitrary>], iteration_bounds = array<i64: 2, 1>, scalar_prefetch = 0 : i64, scratch_operands = 3 : i64, tpu.core_type = #tpu.core_type<tc>, window_params = [{transform_indices = @transform_0, window_bounds = array<i64: 1, 8, 32>}, {transform_indices = @transform_1, window_bounds = array<i64: 1, 1, 8>}, {pipeline_mode = #tpu.pipeline_mode<synchronous>, transform_indices = @transform_2, window_bounds = array<i64: 4, 32, 8>}, {pipeline_mode = #tpu.pipeline_mode<synchronous>, transform_indices = @transform_3, window_bounds = array<i64: 4, 1, 8>}, {pipeline_mode = #tpu.pipeline_mode<synchronous>, transform_indices = @transform_4, window_bounds = array<i64: 4, 32, 8>}, {pipeline_mode = #tpu.pipeline_mode<synchronous>, transform_indices = @transform_5, window_bounds = array<i64: 4, 1, 8>}, {pipeline_mode = #tpu.pipeline_mode<synchronous>, transform_indices = @transform_6, window_bounds = array<i64: 4, 32, 8>}, {pipeline_mode = #tpu.pipeline_mode<synchronous>, transform_indices = @transform_7, window_bounds = array<i64: 4, 1, 8>}, {pipeline_mode = #tpu.pipeline_mode<synchronous>, transform_indices = @transform_8, window_bounds = array<i64: 32, 32>}, {pipeline_mode = #tpu.pipeline_mode<synchronous>, transform_indices = @transform_9, window_bounds = array<i64: 1, 32>}, {pipeline_mode = #tpu.pipeline_mode<synchronous>, transform_indices = @transform_10, window_bounds = array<i64: 1, 32>}, {pipeline_mode = #tpu.pipeline_mode<synchronous>, transform_indices = @transform_11, window_bounds = array<i64: 1, 32>}, {pipeline_mode = #tpu.pipeline_mode<synchronous>, transform_indices = @transform_12, window_bounds = array<i64: 32, 128>}, {pipeline_mode = #tpu.pipeline_mode<synchronous>, transform_indices = @transform_13, window_bounds = array<i64: 1, 128>}, {pipeline_mode = #tpu.pipeline_mode<synchronous>, transform_indices = @transform_14, window_bounds = array<i64: 128, 32>}, {pipeline_mode = #tpu.pipeline_mode<synchronous>, transform_indices = @transform_15, window_bounds = array<i64: 1, 32>}, {transform_indices = @transform_16, window_bounds = array<i64: 1, 8, 32>}]} {
    %c0_i32 = arith.constant 0 : i32
    %0 = arith.cmpi eq, %arg1, %c0_i32 : i32
    %1 = arith.extui %0 : i1 to i32
    %c0_i32_0 = arith.constant 0 : i32
    %2 = arith.cmpi ne, %1, %c0_i32_0 : i32
    scf.if %2 {
      %c0_114 = arith.constant 0 : index
      %c0_115 = arith.constant 0 : index
      %c0_116 = arith.constant 0 : index
      %209 = vector.load %arg2[%c0_114, %c0_115, %c0_116] : memref<1x8x32xf32, #tpu.memory_space<vmem>>, vector<1x8x32xf32>
      %210 = vector.shape_cast %209 : vector<1x8x32xf32> to vector<8x32xf32>
      %211 = arith.truncf %210 : vector<8x32xf32> to vector<8x32xbf16>
      %c0_117 = arith.constant 0 : index
      %c0_118 = arith.constant 0 : index
      %c0_119 = arith.constant 0 : index
      %212 = vector.load %arg6[%c0_117, %c0_118, %c0_119] : memref<4x32x8xbf16, #tpu.memory_space<vmem>>, vector<1x32x8xbf16>
      %213 = vector.shape_cast %212 : vector<1x32x8xbf16> to vector<32x8xbf16>
      %cst_120 = arith.constant dense<0.000000e+00> : vector<8x8xf32>
      %214 = tpu.matmul %211, %213, %cst_120 {dimension_numbers = #tpu.dot_dimension_numbers<[1], [0], [0], [1], [0, 0, 1, 1], [], []>} : vector<8x32xbf16>, vector<32x8xbf16>, vector<8x8xf32> -> vector<8x8xf32>
      %c0_121 = arith.constant 0 : index
      %c0_122 = arith.constant 0 : index
      %c0_123 = arith.constant 0 : index
      %215 = vector.load %arg7[%c0_121, %c0_122, %c0_123] : memref<4x1x8xf32, #tpu.memory_space<vmem>>, vector<1x1x8xf32>
      %216 = vector.shape_cast %215 : vector<1x1x8xf32> to vector<1x8xf32>
      %217 = vector.broadcast %216 : vector<1x8xf32> to vector<8x8xf32>
      %218 = arith.addf %214, %217 : vector<8x8xf32>
      %c0_124 = arith.constant 0 : index
      %c0_125 = arith.constant 0 : index
      %c0_126 = arith.constant 0 : index
      %219 = vector.load %arg8[%c0_124, %c0_125, %c0_126] : memref<4x32x8xbf16, #tpu.memory_space<vmem>>, vector<1x32x8xbf16>
      %220 = vector.shape_cast %219 : vector<1x32x8xbf16> to vector<32x8xbf16>
      %cst_127 = arith.constant dense<0.000000e+00> : vector<8x8xf32>
      %221 = tpu.matmul %211, %220, %cst_127 {dimension_numbers = #tpu.dot_dimension_numbers<[1], [0], [0], [1], [0, 0, 1, 1], [], []>} : vector<8x32xbf16>, vector<32x8xbf16>, vector<8x8xf32> -> vector<8x8xf32>
      %c0_128 = arith.constant 0 : index
      %c0_129 = arith.constant 0 : index
      %c0_130 = arith.constant 0 : index
      %222 = vector.load %arg9[%c0_128, %c0_129, %c0_130] : memref<4x1x8xf32, #tpu.memory_space<vmem>>, vector<1x1x8xf32>
      %223 = vector.shape_cast %222 : vector<1x1x8xf32> to vector<1x8xf32>
      %224 = vector.broadcast %223 : vector<1x8xf32> to vector<8x8xf32>
      %225 = arith.addf %221, %224 : vector<8x8xf32>
      %226 = arith.truncf %218 : vector<8x8xf32> to vector<8x8xbf16>
      %c0_131 = arith.constant 0 : index
      %c0_132 = arith.constant 0 : index
      %c0_133 = arith.constant 0 : index
      %227 = vector.load %arg19[%c0_131, %c0_132, %c0_133] : memref<4x8x8xbf16, #tpu.memory_space<vmem>>, vector<1x8x8xbf16>
      %228 = vector.shape_cast %227 : vector<1x8x8xbf16> to vector<8x8xbf16>
      %229 = vector.shape_cast %226 : vector<8x8xbf16> to vector<1x8x8xbf16>
      tpu.vector_store %arg19[%c0_131, %c0_132, %c0_133], %229 {strides = array<i32>} : memref<4x8x8xbf16, #tpu.memory_space<vmem>>, vector<1x8x8xbf16>,
      %230 = arith.truncf %225 : vector<8x8xf32> to vector<8x8xbf16>
      %c0_134 = arith.constant 0 : index
      %c0_135 = arith.constant 0 : index
      %c0_136 = arith.constant 0 : index
      %231 = vector.load %arg20[%c0_134, %c0_135, %c0_136] : memref<4x8x8xbf16, #tpu.memory_space<vmem>>, vector<1x8x8xbf16>
      %232 = vector.shape_cast %231 : vector<1x8x8xbf16> to vector<8x8xbf16>
      %233 = vector.shape_cast %230 : vector<8x8xbf16> to vector<1x8x8xbf16>
      tpu.vector_store %arg20[%c0_134, %c0_135, %c0_136], %233 {strides = array<i32>} : memref<4x8x8xbf16, #tpu.memory_space<vmem>>, vector<1x8x8xbf16>,
      %c1_137 = arith.constant 1 : index
      %c0_138 = arith.constant 0 : index
      %c0_139 = arith.constant 0 : index
      %234 = vector.load %arg6[%c1_137, %c0_138, %c0_139] : memref<4x32x8xbf16, #tpu.memory_space<vmem>>, vector<1x32x8xbf16>
      %235 = vector.shape_cast %234 : vector<1x32x8xbf16> to vector<32x8xbf16>
      %cst_140 = arith.constant dense<0.000000e+00> : vector<8x8xf32>
      %236 = tpu.matmul %211, %235, %cst_140 {dimension_numbers = #tpu.dot_dimension_numbers<[1], [0], [0], [1], [0, 0, 1, 1], [], []>} : vector<8x32xbf16>, vector<32x8xbf16>, vector<8x8xf32> -> vector<8x8xf32>
      %c1_141 = arith.constant 1 : index
      %c0_142 = arith.constant 0 : index
      %c0_143 = arith.constant 0 : index
      %237 = vector.load %arg7[%c1_141, %c0_142, %c0_143] : memref<4x1x8xf32, #tpu.memory_space<vmem>>, vector<1x1x8xf32>
      %238 = vector.shape_cast %237 : vector<1x1x8xf32> to vector<1x8xf32>
      %239 = vector.broadcast %238 : vector<1x8xf32> to vector<8x8xf32>
      %240 = arith.addf %236, %239 : vector<8x8xf32>
      %c1_144 = arith.constant 1 : index
      %c0_145 = arith.constant 0 : index
      %c0_146 = arith.constant 0 : index
      %241 = vector.load %arg8[%c1_144, %c0_145, %c0_146] : memref<4x32x8xbf16, #tpu.memory_space<vmem>>, vector<1x32x8xbf16>
      %242 = vector.shape_cast %241 : vector<1x32x8xbf16> to vector<32x8xbf16>
      %cst_147 = arith.constant dense<0.000000e+00> : vector<8x8xf32>
      %243 = tpu.matmul %211, %242, %cst_147 {dimension_numbers = #tpu.dot_dimension_numbers<[1], [0], [0], [1], [0, 0, 1, 1], [], []>} : vector<8x32xbf16>, vector<32x8xbf16>, vector<8x8xf32> -> vector<8x8xf32>
      %c1_148 = arith.constant 1 : index
      %c0_149 = arith.constant 0 : index
      %c0_150 = arith.constant 0 : index
      %244 = vector.load %arg9[%c1_148, %c0_149, %c0_150] : memref<4x1x8xf32, #tpu.memory_space<vmem>>, vector<1x1x8xf32>
      %245 = vector.shape_cast %244 : vector<1x1x8xf32> to vector<1x8xf32>
      %246 = vector.broadcast %245 : vector<1x8xf32> to vector<8x8xf32>
      %247 = arith.addf %243, %246 : vector<8x8xf32>
      %248 = arith.truncf %240 : vector<8x8xf32> to vector<8x8xbf16>
      %c1_151 = arith.constant 1 : index
      %c0_152 = arith.constant 0 : index
      %c0_153 = arith.constant 0 : index
      %249 = vector.load %arg19[%c1_151, %c0_152, %c0_153] : memref<4x8x8xbf16, #tpu.memory_space<vmem>>, vector<1x8x8xbf16>
      %250 = vector.shape_cast %249 : vector<1x8x8xbf16> to vector<8x8xbf16>
      %251 = vector.shape_cast %248 : vector<8x8xbf16> to vector<1x8x8xbf16>
      tpu.vector_store %arg19[%c1_151, %c0_152, %c0_153], %251 {strides = array<i32>} : memref<4x8x8xbf16, #tpu.memory_space<vmem>>, vector<1x8x8xbf16>,
      %252 = arith.truncf %247 : vector<8x8xf32> to vector<8x8xbf16>
      %c1_154 = arith.constant 1 : index
      %c0_155 = arith.constant 0 : index
      %c0_156 = arith.constant 0 : index
      %253 = vector.load %arg20[%c1_154, %c0_155, %c0_156] : memref<4x8x8xbf16, #tpu.memory_space<vmem>>, vector<1x8x8xbf16>
      %254 = vector.shape_cast %253 : vector<1x8x8xbf16> to vector<8x8xbf16>
      %255 = vector.shape_cast %252 : vector<8x8xbf16> to vector<1x8x8xbf16>
      tpu.vector_store %arg20[%c1_154, %c0_155, %c0_156], %255 {strides = array<i32>} : memref<4x8x8xbf16, #tpu.memory_space<vmem>>, vector<1x8x8xbf16>,
      %c2_157 = arith.constant 2 : index
      %c0_158 = arith.constant 0 : index
      %c0_159 = arith.constant 0 : index
      %256 = vector.load %arg6[%c2_157, %c0_158, %c0_159] : memref<4x32x8xbf16, #tpu.memory_space<vmem>>, vector<1x32x8xbf16>
      %257 = vector.shape_cast %256 : vector<1x32x8xbf16> to vector<32x8xbf16>
      %cst_160 = arith.constant dense<0.000000e+00> : vector<8x8xf32>
      %258 = tpu.matmul %211, %257, %cst_160 {dimension_numbers = #tpu.dot_dimension_numbers<[1], [0], [0], [1], [0, 0, 1, 1], [], []>} : vector<8x32xbf16>, vector<32x8xbf16>, vector<8x8xf32> -> vector<8x8xf32>
      %c2_161 = arith.constant 2 : index
      %c0_162 = arith.constant 0 : index
      %c0_163 = arith.constant 0 : index
      %259 = vector.load %arg7[%c2_161, %c0_162, %c0_163] : memref<4x1x8xf32, #tpu.memory_space<vmem>>, vector<1x1x8xf32>
      %260 = vector.shape_cast %259 : vector<1x1x8xf32> to vector<1x8xf32>
      %261 = vector.broadcast %260 : vector<1x8xf32> to vector<8x8xf32>
      %262 = arith.addf %258, %261 : vector<8x8xf32>
      %c2_164 = arith.constant 2 : index
      %c0_165 = arith.constant 0 : index
      %c0_166 = arith.constant 0 : index
      %263 = vector.load %arg8[%c2_164, %c0_165, %c0_166] : memref<4x32x8xbf16, #tpu.memory_space<vmem>>, vector<1x32x8xbf16>
      %264 = vector.shape_cast %263 : vector<1x32x8xbf16> to vector<32x8xbf16>
      %cst_167 = arith.constant dense<0.000000e+00> : vector<8x8xf32>
      %265 = tpu.matmul %211, %264, %cst_167 {dimension_numbers = #tpu.dot_dimension_numbers<[1], [0], [0], [1], [0, 0, 1, 1], [], []>} : vector<8x32xbf16>, vector<32x8xbf16>, vector<8x8xf32> -> vector<8x8xf32>
      %c2_168 = arith.constant 2 : index
      %c0_169 = arith.constant 0 : index
      %c0_170 = arith.constant 0 : index
      %266 = vector.load %arg9[%c2_168, %c0_169, %c0_170] : memref<4x1x8xf32, #tpu.memory_space<vmem>>, vector<1x1x8xf32>
      %267 = vector.shape_cast %266 : vector<1x1x8xf32> to vector<1x8xf32>
      %268 = vector.broadcast %267 : vector<1x8xf32> to vector<8x8xf32>
      %269 = arith.addf %265, %268 : vector<8x8xf32>
      %270 = arith.truncf %262 : vector<8x8xf32> to vector<8x8xbf16>
      %c2_171 = arith.constant 2 : index
      %c0_172 = arith.constant 0 : index
      %c0_173 = arith.constant 0 : index
      %271 = vector.load %arg19[%c2_171, %c0_172, %c0_173] : memref<4x8x8xbf16, #tpu.memory_space<vmem>>, vector<1x8x8xbf16>
      %272 = vector.shape_cast %271 : vector<1x8x8xbf16> to vector<8x8xbf16>
      %273 = vector.shape_cast %270 : vector<8x8xbf16> to vector<1x8x8xbf16>
      tpu.vector_store %arg19[%c2_171, %c0_172, %c0_173], %273 {strides = array<i32>} : memref<4x8x8xbf16, #tpu.memory_space<vmem>>, vector<1x8x8xbf16>,
      %274 = arith.truncf %269 : vector<8x8xf32> to vector<8x8xbf16>
      %c2_174 = arith.constant 2 : index
      %c0_175 = arith.constant 0 : index
      %c0_176 = arith.constant 0 : index
      %275 = vector.load %arg20[%c2_174, %c0_175, %c0_176] : memref<4x8x8xbf16, #tpu.memory_space<vmem>>, vector<1x8x8xbf16>
      %276 = vector.shape_cast %275 : vector<1x8x8xbf16> to vector<8x8xbf16>
      %277 = vector.shape_cast %274 : vector<8x8xbf16> to vector<1x8x8xbf16>
      tpu.vector_store %arg20[%c2_174, %c0_175, %c0_176], %277 {strides = array<i32>} : memref<4x8x8xbf16, #tpu.memory_space<vmem>>, vector<1x8x8xbf16>,
      %c3_177 = arith.constant 3 : index
      %c0_178 = arith.constant 0 : index
      %c0_179 = arith.constant 0 : index
      %278 = vector.load %arg6[%c3_177, %c0_178, %c0_179] : memref<4x32x8xbf16, #tpu.memory_space<vmem>>, vector<1x32x8xbf16>
      %279 = vector.shape_cast %278 : vector<1x32x8xbf16> to vector<32x8xbf16>
      %cst_180 = arith.constant dense<0.000000e+00> : vector<8x8xf32>
      %280 = tpu.matmul %211, %279, %cst_180 {dimension_numbers = #tpu.dot_dimension_numbers<[1], [0], [0], [1], [0, 0, 1, 1], [], []>} : vector<8x32xbf16>, vector<32x8xbf16>, vector<8x8xf32> -> vector<8x8xf32>
      %c3_181 = arith.constant 3 : index
      %c0_182 = arith.constant 0 : index
      %c0_183 = arith.constant 0 : index
      %281 = vector.load %arg7[%c3_181, %c0_182, %c0_183] : memref<4x1x8xf32, #tpu.memory_space<vmem>>, vector<1x1x8xf32>
      %282 = vector.shape_cast %281 : vector<1x1x8xf32> to vector<1x8xf32>
      %283 = vector.broadcast %282 : vector<1x8xf32> to vector<8x8xf32>
      %284 = arith.addf %280, %283 : vector<8x8xf32>
      %c3_184 = arith.constant 3 : index
      %c0_185 = arith.constant 0 : index
      %c0_186 = arith.constant 0 : index
      %285 = vector.load %arg8[%c3_184, %c0_185, %c0_186] : memref<4x32x8xbf16, #tpu.memory_space<vmem>>, vector<1x32x8xbf16>
      %286 = vector.shape_cast %285 : vector<1x32x8xbf16> to vector<32x8xbf16>
      %cst_187 = arith.constant dense<0.000000e+00> : vector<8x8xf32>
      %287 = tpu.matmul %211, %286, %cst_187 {dimension_numbers = #tpu.dot_dimension_numbers<[1], [0], [0], [1], [0, 0, 1, 1], [], []>} : vector<8x32xbf16>, vector<32x8xbf16>, vector<8x8xf32> -> vector<8x8xf32>
      %c3_188 = arith.constant 3 : index
      %c0_189 = arith.constant 0 : index
      %c0_190 = arith.constant 0 : index
      %288 = vector.load %arg9[%c3_188, %c0_189, %c0_190] : memref<4x1x8xf32, #tpu.memory_space<vmem>>, vector<1x1x8xf32>
      %289 = vector.shape_cast %288 : vector<1x1x8xf32> to vector<1x8xf32>
      %290 = vector.broadcast %289 : vector<1x8xf32> to vector<8x8xf32>
      %291 = arith.addf %287, %290 : vector<8x8xf32>
      %292 = arith.truncf %284 : vector<8x8xf32> to vector<8x8xbf16>
      %c3_191 = arith.constant 3 : index
      %c0_192 = arith.constant 0 : index
      %c0_193 = arith.constant 0 : index
      %293 = vector.load %arg19[%c3_191, %c0_192, %c0_193] : memref<4x8x8xbf16, #tpu.memory_space<vmem>>, vector<1x8x8xbf16>
      %294 = vector.shape_cast %293 : vector<1x8x8xbf16> to vector<8x8xbf16>
      %295 = vector.shape_cast %292 : vector<8x8xbf16> to vector<1x8x8xbf16>
      tpu.vector_store %arg19[%c3_191, %c0_192, %c0_193], %295 {strides = array<i32>} : memref<4x8x8xbf16, #tpu.memory_space<vmem>>, vector<1x8x8xbf16>,
      %296 = arith.truncf %291 : vector<8x8xf32> to vector<8x8xbf16>
      %c3_194 = arith.constant 3 : index
      %c0_195 = arith.constant 0 : index
      %c0_196 = arith.constant 0 : index
      %297 = vector.load %arg20[%c3_194, %c0_195, %c0_196] : memref<4x8x8xbf16, #tpu.memory_space<vmem>>, vector<1x8x8xbf16>
      %298 = vector.shape_cast %297 : vector<1x8x8xbf16> to vector<8x8xbf16>
      %299 = vector.shape_cast %296 : vector<8x8xbf16> to vector<1x8x8xbf16>
      tpu.vector_store %arg20[%c3_194, %c0_195, %c0_196], %299 {strides = array<i32>} : memref<4x8x8xbf16, #tpu.memory_space<vmem>>, vector<1x8x8xbf16>,
    } else {
    }
    %c8_i32 = arith.constant 8 : i32
    %3 = arith.muli %arg1, %c8_i32 : i32
    %4 = tpu.assume_multiple %3, 8 : i32
    %c0 = arith.constant 0 : index
    %5 = arith.index_cast %4 : i32 to index
    %c0_1 = arith.constant 0 : index
    %6 = vector.load %arg2[%c0, %5, %c0_1] : memref<1x8x32xf32, #tpu.memory_space<vmem>>, vector<1x8x32xf32>
    %7 = vector.shape_cast %6 : vector<1x8x32xf32> to vector<8x32xf32>
    %8 = arith.truncf %7 : vector<8x32xf32> to vector<8x32xbf16>
    %c0_2 = arith.constant 0 : index
    %c0_3 = arith.constant 0 : index
    %c0_4 = arith.constant 0 : index
    %9 = vector.load %arg3[%c0_2, %c0_3, %c0_4] : memref<1x1x8xf32, #tpu.memory_space<vmem>>, vector<1x1x8xf32>
    %10 = vector.shape_cast %9 : vector<1x1x8xf32> to vector<1x8xf32>
    %cst = arith.constant 1.000000e+00 : f32
    %11 = vector.broadcast %cst : f32 to vector<1x8xf32>
    %12 = arith.subf %11, %10 : vector<1x8xf32>
    %cst_5 = arith.constant -1.000000e+09 : f32
    %13 = vector.broadcast %cst_5 : f32 to vector<1x8xf32>
    %14 = arith.mulf %12, %13 : vector<1x8xf32>
    %c0_6 = arith.constant 0 : index
    %c0_7 = arith.constant 0 : index
    %c0_8 = arith.constant 0 : index
    %15 = vector.load %arg4[%c0_6, %c0_7, %c0_8] : memref<4x32x8xbf16, #tpu.memory_space<vmem>>, vector<1x32x8xbf16>
    %16 = vector.shape_cast %15 : vector<1x32x8xbf16> to vector<32x8xbf16>
    %cst_9 = arith.constant dense<0.000000e+00> : vector<8x8xf32>
    %17 = tpu.matmul %8, %16, %cst_9 {dimension_numbers = #tpu.dot_dimension_numbers<[1], [0], [0], [1], [0, 0, 1, 1], [], []>} : vector<8x32xbf16>, vector<32x8xbf16>, vector<8x8xf32> -> vector<8x8xf32>
    %c0_10 = arith.constant 0 : index
    %c0_11 = arith.constant 0 : index
    %c0_12 = arith.constant 0 : index
    %18 = vector.load %arg5[%c0_10, %c0_11, %c0_12] : memref<4x1x8xf32, #tpu.memory_space<vmem>>, vector<1x1x8xf32>
    %19 = vector.shape_cast %18 : vector<1x1x8xf32> to vector<1x8xf32>
    %20 = vector.broadcast %19 : vector<1x8xf32> to vector<8x8xf32>
    %21 = arith.addf %17, %20 : vector<8x8xf32>
    %22 = arith.truncf %21 : vector<8x8xf32> to vector<8x8xbf16>
    %c0_13 = arith.constant 0 : index
    %c0_14 = arith.constant 0 : index
    %c0_15 = arith.constant 0 : index
    %23 = vector.load %arg19[%c0_13, %c0_14, %c0_15] : memref<4x8x8xbf16, #tpu.memory_space<vmem>>, vector<1x8x8xbf16>
    %24 = vector.shape_cast %23 : vector<1x8x8xbf16> to vector<8x8xbf16>
    %cst_16 = arith.constant dense<0.000000e+00> : vector<8x8xf32>
    %25 = tpu.matmul %22, %24, %cst_16 {dimension_numbers = #tpu.dot_dimension_numbers<[1], [1], [0], [0], [0, 0, 1, 0], [], []>} : vector<8x8xbf16>, vector<8x8xbf16>, vector<8x8xf32> -> vector<8x8xf32>
    %26 = vector.broadcast %14 : vector<1x8xf32> to vector<8x8xf32>
    %27 = arith.addf %25, %26 : vector<8x8xf32>
    %cst_17 = arith.constant dense<0xFF800000> : vector<8xf32>
    %28 = vector.multi_reduction <maximumf>, %27, %cst_17 [1] : vector<8x8xf32> to vector<8xf32>
    %29 = vector.shape_cast %28 : vector<8xf32> to vector<8x1xf32>
    %30 = vector.broadcast %29 : vector<8x1xf32> to vector<8x8xf32>
    %31 = arith.subf %27, %30 : vector<8x8xf32>
    %32 = math.exp %31 : vector<8x8xf32>
    %cst_18 = arith.constant dense<0.000000e+00> : vector<8xf32>
    %33 = vector.multi_reduction <add>, %32, %cst_18 [1] : vector<8x8xf32> to vector<8xf32>
    %34 = vector.shape_cast %33 : vector<8xf32> to vector<8x1xf32>
    %35 = tpu.reciprocal %34 {approx = true} : vector<8x1xf32> -> vector<8x1xf32>
    %36 = vector.broadcast %35 : vector<8x1xf32> to vector<8x8xf32>
    %37 = arith.mulf %32, %36 : vector<8x8xf32>
    %38 = arith.truncf %37 : vector<8x8xf32> to vector<8x8xbf16>
    %c0_19 = arith.constant 0 : index
    %c0_20 = arith.constant 0 : index
    %c0_21 = arith.constant 0 : index
    %39 = vector.load %arg20[%c0_19, %c0_20, %c0_21] : memref<4x8x8xbf16, #tpu.memory_space<vmem>>, vector<1x8x8xbf16>
    %40 = vector.shape_cast %39 : vector<1x8x8xbf16> to vector<8x8xbf16>
    %cst_22 = arith.constant dense<0.000000e+00> : vector<8x8xf32>
    %41 = tpu.matmul %38, %40, %cst_22 {dimension_numbers = #tpu.dot_dimension_numbers<[1], [0], [0], [1], [0, 0, 1, 1], [], []>} : vector<8x8xbf16>, vector<8x8xbf16>, vector<8x8xf32> -> vector<8x8xf32>
    %42 = arith.truncf %41 : vector<8x8xf32> to vector<8x8xbf16>
    %c0_23 = arith.constant 0 : index
    %c0_24 = arith.constant 0 : index
    %43 = vector.load %arg21[%c0_23, %c0_24] : memref<8x32xbf16, #tpu.memory_space<vmem>>, vector<8x8xbf16>
    tpu.vector_store %arg21[%c0_23, %c0_24], %42 {strides = array<i32>} : memref<8x32xbf16, #tpu.memory_space<vmem>>, vector<8x8xbf16>,
    %c1 = arith.constant 1 : index
    %c0_25 = arith.constant 0 : index
    %c0_26 = arith.constant 0 : index
    %44 = vector.load %arg4[%c1, %c0_25, %c0_26] : memref<4x32x8xbf16, #tpu.memory_space<vmem>>, vector<1x32x8xbf16>
    %45 = vector.shape_cast %44 : vector<1x32x8xbf16> to vector<32x8xbf16>
    %cst_27 = arith.constant dense<0.000000e+00> : vector<8x8xf32>
    %46 = tpu.matmul %8, %45, %cst_27 {dimension_numbers = #tpu.dot_dimension_numbers<[1], [0], [0], [1], [0, 0, 1, 1], [], []>} : vector<8x32xbf16>, vector<32x8xbf16>, vector<8x8xf32> -> vector<8x8xf32>
    %c1_28 = arith.constant 1 : index
    %c0_29 = arith.constant 0 : index
    %c0_30 = arith.constant 0 : index
    %47 = vector.load %arg5[%c1_28, %c0_29, %c0_30] : memref<4x1x8xf32, #tpu.memory_space<vmem>>, vector<1x1x8xf32>
    %48 = vector.shape_cast %47 : vector<1x1x8xf32> to vector<1x8xf32>
    %49 = vector.broadcast %48 : vector<1x8xf32> to vector<8x8xf32>
    %50 = arith.addf %46, %49 : vector<8x8xf32>
    %51 = arith.truncf %50 : vector<8x8xf32> to vector<8x8xbf16>
    %c1_31 = arith.constant 1 : index
    %c0_32 = arith.constant 0 : index
    %c0_33 = arith.constant 0 : index
    %52 = vector.load %arg19[%c1_31, %c0_32, %c0_33] : memref<4x8x8xbf16, #tpu.memory_space<vmem>>, vector<1x8x8xbf16>
    %53 = vector.shape_cast %52 : vector<1x8x8xbf16> to vector<8x8xbf16>
    %cst_34 = arith.constant dense<0.000000e+00> : vector<8x8xf32>
    %54 = tpu.matmul %51, %53, %cst_34 {dimension_numbers = #tpu.dot_dimension_numbers<[1], [1], [0], [0], [0, 0, 1, 0], [], []>} : vector<8x8xbf16>, vector<8x8xbf16>, vector<8x8xf32> -> vector<8x8xf32>
    %55 = vector.broadcast %14 : vector<1x8xf32> to vector<8x8xf32>
    %56 = arith.addf %54, %55 : vector<8x8xf32>
    %cst_35 = arith.constant dense<0xFF800000> : vector<8xf32>
    %57 = vector.multi_reduction <maximumf>, %56, %cst_35 [1] : vector<8x8xf32> to vector<8xf32>
    %58 = vector.shape_cast %57 : vector<8xf32> to vector<8x1xf32>
    %59 = vector.broadcast %58 : vector<8x1xf32> to vector<8x8xf32>
    %60 = arith.subf %56, %59 : vector<8x8xf32>
    %61 = math.exp %60 : vector<8x8xf32>
    %cst_36 = arith.constant dense<0.000000e+00> : vector<8xf32>
    %62 = vector.multi_reduction <add>, %61, %cst_36 [1] : vector<8x8xf32> to vector<8xf32>
    %63 = vector.shape_cast %62 : vector<8xf32> to vector<8x1xf32>
    %64 = tpu.reciprocal %63 {approx = true} : vector<8x1xf32> -> vector<8x1xf32>
    %65 = vector.broadcast %64 : vector<8x1xf32> to vector<8x8xf32>
    %66 = arith.mulf %61, %65 : vector<8x8xf32>
    %67 = arith.truncf %66 : vector<8x8xf32> to vector<8x8xbf16>
    %c1_37 = arith.constant 1 : index
    %c0_38 = arith.constant 0 : index
    %c0_39 = arith.constant 0 : index
    %68 = vector.load %arg20[%c1_37, %c0_38, %c0_39] : memref<4x8x8xbf16, #tpu.memory_space<vmem>>, vector<1x8x8xbf16>
    %69 = vector.shape_cast %68 : vector<1x8x8xbf16> to vector<8x8xbf16>
    %cst_40 = arith.constant dense<0.000000e+00> : vector<8x8xf32>
    %70 = tpu.matmul %67, %69, %cst_40 {dimension_numbers = #tpu.dot_dimension_numbers<[1], [0], [0], [1], [0, 0, 1, 1], [], []>} : vector<8x8xbf16>, vector<8x8xbf16>, vector<8x8xf32> -> vector<8x8xf32>
    %71 = arith.truncf %70 : vector<8x8xf32> to vector<8x8xbf16>
    %c0_41 = arith.constant 0 : index
    %c8 = arith.constant 8 : index
    %72 = vector.load %arg21[%c0_41, %c8] : memref<8x32xbf16, #tpu.memory_space<vmem>>, vector<8x8xbf16>
    tpu.vector_store %arg21[%c0_41, %c8], %71 {strides = array<i32>} : memref<8x32xbf16, #tpu.memory_space<vmem>>, vector<8x8xbf16>,
    %c2 = arith.constant 2 : index
    %c0_42 = arith.constant 0 : index
    %c0_43 = arith.constant 0 : index
    %73 = vector.load %arg4[%c2, %c0_42, %c0_43] : memref<4x32x8xbf16, #tpu.memory_space<vmem>>, vector<1x32x8xbf16>
    %74 = vector.shape_cast %73 : vector<1x32x8xbf16> to vector<32x8xbf16>
    %cst_44 = arith.constant dense<0.000000e+00> : vector<8x8xf32>
    %75 = tpu.matmul %8, %74, %cst_44 {dimension_numbers = #tpu.dot_dimension_numbers<[1], [0], [0], [1], [0, 0, 1, 1], [], []>} : vector<8x32xbf16>, vector<32x8xbf16>, vector<8x8xf32> -> vector<8x8xf32>
    %c2_45 = arith.constant 2 : index
    %c0_46 = arith.constant 0 : index
    %c0_47 = arith.constant 0 : index
    %76 = vector.load %arg5[%c2_45, %c0_46, %c0_47] : memref<4x1x8xf32, #tpu.memory_space<vmem>>, vector<1x1x8xf32>
    %77 = vector.shape_cast %76 : vector<1x1x8xf32> to vector<1x8xf32>
    %78 = vector.broadcast %77 : vector<1x8xf32> to vector<8x8xf32>
    %79 = arith.addf %75, %78 : vector<8x8xf32>
    %80 = arith.truncf %79 : vector<8x8xf32> to vector<8x8xbf16>
    %c2_48 = arith.constant 2 : index
    %c0_49 = arith.constant 0 : index
    %c0_50 = arith.constant 0 : index
    %81 = vector.load %arg19[%c2_48, %c0_49, %c0_50] : memref<4x8x8xbf16, #tpu.memory_space<vmem>>, vector<1x8x8xbf16>
    %82 = vector.shape_cast %81 : vector<1x8x8xbf16> to vector<8x8xbf16>
    %cst_51 = arith.constant dense<0.000000e+00> : vector<8x8xf32>
    %83 = tpu.matmul %80, %82, %cst_51 {dimension_numbers = #tpu.dot_dimension_numbers<[1], [1], [0], [0], [0, 0, 1, 0], [], []>} : vector<8x8xbf16>, vector<8x8xbf16>, vector<8x8xf32> -> vector<8x8xf32>
    %84 = vector.broadcast %14 : vector<1x8xf32> to vector<8x8xf32>
    %85 = arith.addf %83, %84 : vector<8x8xf32>
    %cst_52 = arith.constant dense<0xFF800000> : vector<8xf32>
    %86 = vector.multi_reduction <maximumf>, %85, %cst_52 [1] : vector<8x8xf32> to vector<8xf32>
    %87 = vector.shape_cast %86 : vector<8xf32> to vector<8x1xf32>
    %88 = vector.broadcast %87 : vector<8x1xf32> to vector<8x8xf32>
    %89 = arith.subf %85, %88 : vector<8x8xf32>
    %90 = math.exp %89 : vector<8x8xf32>
    %cst_53 = arith.constant dense<0.000000e+00> : vector<8xf32>
    %91 = vector.multi_reduction <add>, %90, %cst_53 [1] : vector<8x8xf32> to vector<8xf32>
    %92 = vector.shape_cast %91 : vector<8xf32> to vector<8x1xf32>
    %93 = tpu.reciprocal %92 {approx = true} : vector<8x1xf32> -> vector<8x1xf32>
    %94 = vector.broadcast %93 : vector<8x1xf32> to vector<8x8xf32>
    %95 = arith.mulf %90, %94 : vector<8x8xf32>
    %96 = arith.truncf %95 : vector<8x8xf32> to vector<8x8xbf16>
    %c2_54 = arith.constant 2 : index
    %c0_55 = arith.constant 0 : index
    %c0_56 = arith.constant 0 : index
    %97 = vector.load %arg20[%c2_54, %c0_55, %c0_56] : memref<4x8x8xbf16, #tpu.memory_space<vmem>>, vector<1x8x8xbf16>
    %98 = vector.shape_cast %97 : vector<1x8x8xbf16> to vector<8x8xbf16>
    %cst_57 = arith.constant dense<0.000000e+00> : vector<8x8xf32>
    %99 = tpu.matmul %96, %98, %cst_57 {dimension_numbers = #tpu.dot_dimension_numbers<[1], [0], [0], [1], [0, 0, 1, 1], [], []>} : vector<8x8xbf16>, vector<8x8xbf16>, vector<8x8xf32> -> vector<8x8xf32>
    %100 = arith.truncf %99 : vector<8x8xf32> to vector<8x8xbf16>
    %c0_58 = arith.constant 0 : index
    %c16 = arith.constant 16 : index
    %101 = vector.load %arg21[%c0_58, %c16] : memref<8x32xbf16, #tpu.memory_space<vmem>>, vector<8x8xbf16>
    tpu.vector_store %arg21[%c0_58, %c16], %100 {strides = array<i32>} : memref<8x32xbf16, #tpu.memory_space<vmem>>, vector<8x8xbf16>,
    %c3 = arith.constant 3 : index
    %c0_59 = arith.constant 0 : index
    %c0_60 = arith.constant 0 : index
    %102 = vector.load %arg4[%c3, %c0_59, %c0_60] : memref<4x32x8xbf16, #tpu.memory_space<vmem>>, vector<1x32x8xbf16>
    %103 = vector.shape_cast %102 : vector<1x32x8xbf16> to vector<32x8xbf16>
    %cst_61 = arith.constant dense<0.000000e+00> : vector<8x8xf32>
    %104 = tpu.matmul %8, %103, %cst_61 {dimension_numbers = #tpu.dot_dimension_numbers<[1], [0], [0], [1], [0, 0, 1, 1], [], []>} : vector<8x32xbf16>, vector<32x8xbf16>, vector<8x8xf32> -> vector<8x8xf32>
    %c3_62 = arith.constant 3 : index
    %c0_63 = arith.constant 0 : index
    %c0_64 = arith.constant 0 : index
    %105 = vector.load %arg5[%c3_62, %c0_63, %c0_64] : memref<4x1x8xf32, #tpu.memory_space<vmem>>, vector<1x1x8xf32>
    %106 = vector.shape_cast %105 : vector<1x1x8xf32> to vector<1x8xf32>
    %107 = vector.broadcast %106 : vector<1x8xf32> to vector<8x8xf32>
    %108 = arith.addf %104, %107 : vector<8x8xf32>
    %109 = arith.truncf %108 : vector<8x8xf32> to vector<8x8xbf16>
    %c3_65 = arith.constant 3 : index
    %c0_66 = arith.constant 0 : index
    %c0_67 = arith.constant 0 : index
    %110 = vector.load %arg19[%c3_65, %c0_66, %c0_67] : memref<4x8x8xbf16, #tpu.memory_space<vmem>>, vector<1x8x8xbf16>
    %111 = vector.shape_cast %110 : vector<1x8x8xbf16> to vector<8x8xbf16>
    %cst_68 = arith.constant dense<0.000000e+00> : vector<8x8xf32>
    %112 = tpu.matmul %109, %111, %cst_68 {dimension_numbers = #tpu.dot_dimension_numbers<[1], [1], [0], [0], [0, 0, 1, 0], [], []>} : vector<8x8xbf16>, vector<8x8xbf16>, vector<8x8xf32> -> vector<8x8xf32>
    %113 = vector.broadcast %14 : vector<1x8xf32> to vector<8x8xf32>
    %114 = arith.addf %112, %113 : vector<8x8xf32>
    %cst_69 = arith.constant dense<0xFF800000> : vector<8xf32>
    %115 = vector.multi_reduction <maximumf>, %114, %cst_69 [1] : vector<8x8xf32> to vector<8xf32>
    %116 = vector.shape_cast %115 : vector<8xf32> to vector<8x1xf32>
    %117 = vector.broadcast %116 : vector<8x1xf32> to vector<8x8xf32>
    %118 = arith.subf %114, %117 : vector<8x8xf32>
    %119 = math.exp %118 : vector<8x8xf32>
    %cst_70 = arith.constant dense<0.000000e+00> : vector<8xf32>
    %120 = vector.multi_reduction <add>, %119, %cst_70 [1] : vector<8x8xf32> to vector<8xf32>
    %121 = vector.shape_cast %120 : vector<8xf32> to vector<8x1xf32>
    %122 = tpu.reciprocal %121 {approx = true} : vector<8x1xf32> -> vector<8x1xf32>
    %123 = vector.broadcast %122 : vector<8x1xf32> to vector<8x8xf32>
    %124 = arith.mulf %119, %123 : vector<8x8xf32>
    %125 = arith.truncf %124 : vector<8x8xf32> to vector<8x8xbf16>
    %c3_71 = arith.constant 3 : index
    %c0_72 = arith.constant 0 : index
    %c0_73 = arith.constant 0 : index
    %126 = vector.load %arg20[%c3_71, %c0_72, %c0_73] : memref<4x8x8xbf16, #tpu.memory_space<vmem>>, vector<1x8x8xbf16>
    %127 = vector.shape_cast %126 : vector<1x8x8xbf16> to vector<8x8xbf16>
    %cst_74 = arith.constant dense<0.000000e+00> : vector<8x8xf32>
    %128 = tpu.matmul %125, %127, %cst_74 {dimension_numbers = #tpu.dot_dimension_numbers<[1], [0], [0], [1], [0, 0, 1, 1], [], []>} : vector<8x8xbf16>, vector<8x8xbf16>, vector<8x8xf32> -> vector<8x8xf32>
    %129 = arith.truncf %128 : vector<8x8xf32> to vector<8x8xbf16>
    %c0_75 = arith.constant 0 : index
    %c24 = arith.constant 24 : index
    %130 = vector.load %arg21[%c0_75, %c24] : memref<8x32xbf16, #tpu.memory_space<vmem>>, vector<8x8xbf16>
    tpu.vector_store %arg21[%c0_75, %c24], %129 {strides = array<i32>} : memref<8x32xbf16, #tpu.memory_space<vmem>>, vector<8x8xbf16>,
    %c0_76 = arith.constant 0 : index
    %c0_77 = arith.constant 0 : index
    %131 = vector.load %arg21[%c0_76, %c0_77] : memref<8x32xbf16, #tpu.memory_space<vmem>>, vector<8x32xbf16>
    %c0_78 = arith.constant 0 : index
    %c0_79 = arith.constant 0 : index
    %132 = vector.load %arg10[%c0_78, %c0_79] : memref<32x32xbf16, #tpu.memory_space<vmem>>, vector<32x32xbf16>
    %cst_80 = arith.constant dense<0.000000e+00> : vector<8x32xf32>
    %133 = tpu.matmul %131, %132, %cst_80 {dimension_numbers = #tpu.dot_dimension_numbers<[1], [0], [0], [1], [0, 0, 1, 1], [], []>} : vector<8x32xbf16>, vector<32x32xbf16>, vector<8x32xf32> -> vector<8x32xf32>
    %c0_81 = arith.constant 0 : index
    %c0_82 = arith.constant 0 : index
    %134 = vector.load %arg11[%c0_81, %c0_82] : memref<1x32xf32, #tpu.memory_space<vmem>>, vector<1x32xf32>
    %135 = vector.broadcast %134 : vector<1x32xf32> to vector<8x32xf32>
    %136 = arith.addf %133, %135 : vector<8x32xf32>
    %c0_83 = arith.constant 0 : index
    %c0_84 = arith.constant 0 : index
    %137 = vector.load %arg12[%c0_83, %c0_84] : memref<1x32xf32, #tpu.memory_space<vmem>>, vector<1x32xf32>
    %c0_85 = arith.constant 0 : index
    %c0_86 = arith.constant 0 : index
    %138 = vector.load %arg13[%c0_85, %c0_86] : memref<1x32xf32, #tpu.memory_space<vmem>>, vector<1x32xf32>
    %139 = arith.addf %136, %7 : vector<8x32xf32>
    %cst_87 = arith.constant dense<0.000000e+00> : vector<8xf32>
    %140 = vector.multi_reduction <add>, %139, %cst_87 [1] : vector<8x32xf32> to vector<8xf32>
    %141 = vector.shape_cast %140 : vector<8xf32> to vector<8x1xf32>
    %cst_88 = arith.constant 3.200000e+01 : f32
    %142 = vector.broadcast %cst_88 : f32 to vector<8x1xf32>
    %143 = arith.divf %141, %142 : vector<8x1xf32>
    %144 = vector.broadcast %143 : vector<8x1xf32> to vector<8x32xf32>
    %145 = arith.subf %139, %144 : vector<8x32xf32>
    %146 = arith.mulf %145, %145 : vector<8x32xf32>
    %cst_89 = arith.constant dense<0.000000e+00> : vector<8xf32>
    %147 = vector.multi_reduction <add>, %146, %cst_89 [1] : vector<8x32xf32> to vector<8xf32>
    %148 = vector.shape_cast %147 : vector<8xf32> to vector<8x1xf32>
    %cst_90 = arith.constant 3.200000e+01 : f32
    %149 = vector.broadcast %cst_90 : f32 to vector<8x1xf32>
    %150 = arith.divf %148, %149 : vector<8x1xf32>
    %cst_91 = arith.constant 9.99999974E-6 : f32
    %151 = vector.broadcast %cst_91 : f32 to vector<8x1xf32>
    %152 = arith.addf %150, %151 : vector<8x1xf32>
    %153 = math.rsqrt %152 : vector<8x1xf32>
    %154 = vector.broadcast %153 : vector<8x1xf32> to vector<8x32xf32>
    %155 = arith.mulf %145, %154 : vector<8x32xf32>
    %156 = vector.broadcast %137 : vector<1x32xf32> to vector<8x32xf32>
    %157 = arith.mulf %155, %156 : vector<8x32xf32>
    %158 = vector.broadcast %138 : vector<1x32xf32> to vector<8x32xf32>
    %159 = arith.addf %157, %158 : vector<8x32xf32>
    %160 = arith.truncf %159 : vector<8x32xf32> to vector<8x32xbf16>
    %c0_92 = arith.constant 0 : index
    %c0_93 = arith.constant 0 : index
    %161 = vector.load %arg14[%c0_92, %c0_93] : memref<32x128xbf16, #tpu.memory_space<vmem>>, vector<32x128xbf16>
    %cst_94 = arith.constant dense<0.000000e+00> : vector<8x128xf32>
    %162 = tpu.matmul %160, %161, %cst_94 {dimension_numbers = #tpu.dot_dimension_numbers<[1], [0], [0], [1], [0, 0, 1, 1], [], []>} : vector<8x32xbf16>, vector<32x128xbf16>, vector<8x128xf32> -> vector<8x128xf32>
    %c0_95 = arith.constant 0 : index
    %c0_96 = arith.constant 0 : index
    %163 = vector.load %arg15[%c0_95, %c0_96] : memref<1x128xf32, #tpu.memory_space<vmem>>, vector<1x128xf32>
    %164 = vector.broadcast %163 : vector<1x128xf32> to vector<8x128xf32>
    %165 = arith.addf %162, %164 : vector<8x128xf32>
    %cst_97 = arith.constant 5.000000e-01 : f32
    %166 = vector.broadcast %cst_97 : f32 to vector<8x128xf32>
    %167 = arith.mulf %166, %165 : vector<8x128xf32>
    %cst_98 = arith.constant 4.471500e-02 : f32
    %168 = vector.broadcast %cst_98 : f32 to vector<8x128xf32>
    %169 = arith.mulf %168, %165 : vector<8x128xf32>
    %170 = arith.mulf %169, %165 : vector<8x128xf32>
    %171 = arith.mulf %170, %165 : vector<8x128xf32>
    %172 = arith.addf %165, %171 : vector<8x128xf32>
    %cst_99 = arith.constant 0.797884583 : f32
    %173 = vector.broadcast %cst_99 : f32 to vector<8x128xf32>
    %174 = arith.mulf %173, %172 : vector<8x128xf32>
    %175 = math.tanh %174 : vector<8x128xf32>
    %cst_100 = arith.constant 1.000000e+00 : f32
    %176 = vector.broadcast %cst_100 : f32 to vector<8x128xf32>
    %177 = arith.addf %176, %175 : vector<8x128xf32>
    %178 = arith.mulf %167, %177 : vector<8x128xf32>
    %179 = arith.truncf %178 : vector<8x128xf32> to vector<8x128xbf16>
    %c0_101 = arith.constant 0 : index
    %c0_102 = arith.constant 0 : index
    %180 = vector.load %arg16[%c0_101, %c0_102] : memref<128x32xbf16, #tpu.memory_space<vmem>>, vector<128x32xbf16>
    %cst_103 = arith.constant dense<0.000000e+00> : vector<8x32xf32>
    %181 = tpu.matmul %179, %180, %cst_103 {dimension_numbers = #tpu.dot_dimension_numbers<[1], [0], [0], [1], [0, 0, 1, 1], [], []>} : vector<8x128xbf16>, vector<128x32xbf16>, vector<8x32xf32> -> vector<8x32xf32>
    %c0_104 = arith.constant 0 : index
    %c0_105 = arith.constant 0 : index
    %182 = vector.load %arg17[%c0_104, %c0_105] : memref<1x32xf32, #tpu.memory_space<vmem>>, vector<1x32xf32>
    %183 = vector.broadcast %182 : vector<1x32xf32> to vector<8x32xf32>
    %184 = arith.addf %181, %183 : vector<8x32xf32>
    %185 = arith.addf %184, %159 : vector<8x32xf32>
    %cst_106 = arith.constant dense<0.000000e+00> : vector<8xf32>
    %186 = vector.multi_reduction <add>, %185, %cst_106 [1] : vector<8x32xf32> to vector<8xf32>
    %187 = vector.shape_cast %186 : vector<8xf32> to vector<8x1xf32>
    %cst_107 = arith.constant 3.200000e+01 : f32
    %188 = vector.broadcast %cst_107 : f32 to vector<8x1xf32>
    %189 = arith.divf %187, %188 : vector<8x1xf32>
    %190 = vector.broadcast %189 : vector<8x1xf32> to vector<8x32xf32>
    %191 = arith.subf %185, %190 : vector<8x32xf32>
    %192 = arith.mulf %191, %191 : vector<8x32xf32>
    %cst_108 = arith.constant dense<0.000000e+00> : vector<8xf32>
    %193 = vector.multi_reduction <add>, %192, %cst_108 [1] : vector<8x32xf32> to vector<8xf32>
    %194 = vector.shape_cast %193 : vector<8xf32> to vector<8x1xf32>
    %cst_109 = arith.constant 3.200000e+01 : f32
    %195 = vector.broadcast %cst_109 : f32 to vector<8x1xf32>
    %196 = arith.divf %194, %195 : vector<8x1xf32>
    %cst_110 = arith.constant 9.99999974E-6 : f32
    %197 = vector.broadcast %cst_110 : f32 to vector<8x1xf32>
    %198 = arith.addf %196, %197 : vector<8x1xf32>
    %199 = math.rsqrt %198 : vector<8x1xf32>
    %200 = vector.broadcast %199 : vector<8x1xf32> to vector<8x32xf32>
    %201 = arith.mulf %191, %200 : vector<8x32xf32>
    %202 = vector.broadcast %137 : vector<1x32xf32> to vector<8x32xf32>
    %203 = arith.mulf %201, %202 : vector<8x32xf32>
    %204 = vector.broadcast %138 : vector<1x32xf32> to vector<8x32xf32>
    %205 = arith.addf %203, %204 : vector<8x32xf32>
    %c0_111 = arith.constant 0 : index
    %c0_112 = arith.constant 0 : index
    %c0_113 = arith.constant 0 : index
    %206 = vector.load %arg18[%c0_111, %c0_112, %c0_113] : memref<1x8x32xf32, #tpu.memory_space<vmem>>, vector<1x8x32xf32>
    %207 = vector.shape_cast %206 : vector<1x8x32xf32> to vector<8x32xf32>
    %208 = vector.shape_cast %205 : vector<8x32xf32> to vector<1x8x32xf32>
    tpu.vector_store %arg18[%c0_111, %c0_112, %c0_113], %208 {strides = array<i32>} : memref<1x8x32xf32, #tpu.memory_space<vmem>>, vector<1x8x32xf32>,
    return
  }
  func.func @transform_0(%arg0: i32, %arg1: i32) -> (i32, i32, i32) {
    %c0_i32 = arith.constant 0 : i32
    %c0_i32_0 = arith.constant 0 : i32
    %c0_i32_1 = arith.constant 0 : i32
    return %arg0, %c0_i32, %c0_i32_0 : i32, i32, i32
  }
  func.func @transform_1(%arg0: i32, %arg1: i32) -> (i32, i32, i32) {
    %c0_i32 = arith.constant 0 : i32
    %c0_i32_0 = arith.constant 0 : i32
    %c0_i32_1 = arith.constant 0 : i32
    return %arg0, %c0_i32, %c0_i32_0 : i32, i32, i32
  }
  func.func @transform_2(%arg0: i32, %arg1: i32) -> (i32, i32, i32) {
    %c0_i32 = arith.constant 0 : i32
    %c0_i32_0 = arith.constant 0 : i32
    %c0_i32_1 = arith.constant 0 : i32
    %c0_i32_2 = arith.constant 0 : i32
    return %c0_i32, %c0_i32_0, %c0_i32_1 : i32, i32, i32
  }
  func.func @transform_3(%arg0: i32, %arg1: i32) -> (i32, i32, i32) {
    %c0_i32 = arith.constant 0 : i32
    %c0_i32_0 = arith.constant 0 : i32
    %c0_i32_1 = arith.constant 0 : i32
    %c0_i32_2 = arith.constant 0 : i32
    return %c0_i32, %c0_i32_0, %c0_i32_1 : i32, i32, i32
  }
  func.func @transform_4(%arg0: i32, %arg1: i32) -> (i32, i32, i32) {
    %c0_i32 = arith.constant 0 : i32
    %c0_i32_0 = arith.constant 0 : i32
    %c0_i32_1 = arith.constant 0 : i32
    %c0_i32_2 = arith.constant 0 : i32
    return %c0_i32, %c0_i32_0, %c0_i32_1 : i32, i32, i32
  }
  func.func @transform_5(%arg0: i32, %arg1: i32) -> (i32, i32, i32) {
    %c0_i32 = arith.constant 0 : i32
    %c0_i32_0 = arith.constant 0 : i32
    %c0_i32_1 = arith.constant 0 : i32
    %c0_i32_2 = arith.constant 0 : i32
    return %c0_i32, %c0_i32_0, %c0_i32_1 : i32, i32, i32
  }
  func.func @transform_6(%arg0: i32, %arg1: i32) -> (i32, i32, i32) {
    %c0_i32 = arith.constant 0 : i32
    %c0_i32_0 = arith.constant 0 : i32
    %c0_i32_1 = arith.constant 0 : i32
    %c0_i32_2 = arith.constant 0 : i32
    return %c0_i32, %c0_i32_0, %c0_i32_1 : i32, i32, i32
  }
  func.func @transform_7(%arg0: i32, %arg1: i32) -> (i32, i32, i32) {
    %c0_i32 = arith.constant 0 : i32
    %c0_i32_0 = arith.constant 0 : i32
    %c0_i32_1 = arith.constant 0 : i32
    %c0_i32_2 = arith.constant 0 : i32
    return %c0_i32, %c0_i32_0, %c0_i32_1 : i32, i32, i32
  }
  func.func @transform_8(%arg0: i32, %arg1: i32) -> (i32, i32) {
    %c0_i32 = arith.constant 0 : i32
    %c0_i32_0 = arith.constant 0 : i32
    %c0_i32_1 = arith.constant 0 : i32
    return %c0_i32, %c0_i32_0 : i32, i32
  }
  func.func @transform_9(%arg0: i32, %arg1: i32) -> (i32, i32) {
    %c0_i32 = arith.constant 0 : i32
    %c0_i32_0 = arith.constant 0 : i32
    %c0_i32_1 = arith.constant 0 : i32
    return %c0_i32, %c0_i32_0 : i32, i32
  }
  func.func @transform_10(%arg0: i32, %arg1: i32) -> (i32, i32) {
    %c0_i32 = arith.constant 0 : i32
    %c0_i32_0 = arith.constant 0 : i32
    %c0_i32_1 = arith.constant 0 : i32
    return %c0_i32, %c0_i32_0 : i32, i32
  }
  func.func @transform_11(%arg0: i32, %arg1: i32) -> (i32, i32) {
    %c0_i32 = arith.constant 0 : i32
    %c0_i32_0 = arith.constant 0 : i32
    %c0_i32_1 = arith.constant 0 : i32
    return %c0_i32, %c0_i32_0 : i32, i32
  }
  func.func @transform_12(%arg0: i32, %arg1: i32) -> (i32, i32) {
    %c0_i32 = arith.constant 0 : i32
    %c0_i32_0 = arith.constant 0 : i32
    %c0_i32_1 = arith.constant 0 : i32
    return %c0_i32, %c0_i32_0 : i32, i32
  }
  func.func @transform_13(%arg0: i32, %arg1: i32) -> (i32, i32) {
    %c0_i32 = arith.constant 0 : i32
    %c0_i32_0 = arith.constant 0 : i32
    %c0_i32_1 = arith.constant 0 : i32
    return %c0_i32, %c0_i32_0 : i32, i32
  }
  func.func @transform_14(%arg0: i32, %arg1: i32) -> (i32, i32) {
    %c0_i32 = arith.constant 0 : i32
    %c0_i32_0 = arith.constant 0 : i32
    %c0_i32_1 = arith.constant 0 : i32
    return %c0_i32, %c0_i32_0 : i32, i32
  }
  func.func @transform_15(%arg0: i32, %arg1: i32) -> (i32, i32) {
    %c0_i32 = arith.constant 0 : i32
    %c0_i32_0 = arith.constant 0 : i32
    %c0_i32_1 = arith.constant 0 : i32
    return %c0_i32, %c0_i32_0 : i32, i32
  }
  func.func @transform_16(%arg0: i32, %arg1: i32) -> (i32, i32, i32) {
    %c0_i32 = arith.constant 0 : i32
    %c0_i32_0 = arith.constant 0 : i32
    return %arg0, %arg1, %c0_i32 : i32, i32, i32
  }
}

</mosaic_0001>

<llo_original>
// kernel: tpu_custom_call.1
$region0: #{tpu_custom_call.1}
  #allocation0 [shape = 'u32[]', space=smem, size = 0x4, offset = 0x4, fixed_abs, tag = 'smem constant byte address 0x4 - core index']
  #allocation1 [shape = 'u32[144,128]{1,0:T(1,128)}', space=vmem, size = 0x12000, scoped, tag = 'internal scratch']
  #allocation2 [shape = 'bf16[4,8,8]{2,1,0:T(8,128)(2,1)}', space=vmem, size = 0x2000, scoped, tag = 'scratch operand']
  #allocation3 [shape = 'bf16[4,8,8]{2,1,0:T(8,128)(2,1)}', space=vmem, size = 0x2000, scoped, tag = 'scratch operand']
  #allocation4 [shape = 'bf16[8,32]{1,0:T(8,128)(2,1)}', space=vmem, size = 0x800, scoped, tag = 'scratch operand']
  %s0 = inlined_call_operand.vmem [shape: f32[2,8,32], index: 0, kind: input, shape index: {}]
  %s1 = inlined_call_operand.vmem [shape: f32[2,1,8], index: 1, kind: input, shape index: {}]
  %s2 = inlined_call_operand.vmem [shape: bf16[4,32,8], index: 2, kind: input, shape index: {}]
  %s3 = inlined_call_operand.vmem [shape: f32[4,1,8], index: 3, kind: input, shape index: {}]
  %s4 = inlined_call_operand.vmem [shape: bf16[4,32,8], index: 4, kind: input, shape index: {}]
  %s5 = inlined_call_operand.vmem [shape: f32[4,1,8], index: 5, kind: input, shape index: {}]
  %s6 = inlined_call_operand.vmem [shape: bf16[4,32,8], index: 6, kind: input, shape index: {}]
  %s7 = inlined_call_operand.vmem [shape: f32[4,1,8], index: 7, kind: input, shape index: {}]
  %s8 = inlined_call_operand.vmem [shape: bf16[32,32], index: 8, kind: input, shape index: {}]
  %s9 = inlined_call_operand.vmem [shape: f32[1,32], index: 9, kind: input, shape index: {}]
  %s10 = inlined_call_operand.vmem [shape: f32[1,32], index: 10, kind: input, shape index: {}]
  %s11 = inlined_call_operand.vmem [shape: f32[1,32], index: 11, kind: input, shape index: {}]
  %s12 = inlined_call_operand.vmem [shape: bf16[32,128], index: 12, kind: input, shape index: {}]
  %s13 = inlined_call_operand.vmem [shape: f32[1,128], index: 13, kind: input, shape index: {}]
  %s14 = inlined_call_operand.vmem [shape: bf16[128,32], index: 14, kind: input, shape index: {}]
  %s15 = inlined_call_operand.vmem [shape: f32[1,32], index: 15, kind: input, shape index: {}]
  %s16 = inlined_call_operand.hbm [shape: f32[2,8,32], index: 16, kind: output, shape index: {}]
  %s17 = sld [smem:[#allocation0]]
  $region101: #{tpu_custom_call.1} parent=0
    _
  %s19 = ssub.s32 1, %s17
  %s20 = scalar_select 0, %s19, %s17
  $region1: #{tpu_custom_call.1} parent=0
    #allocation5 [shape = 'u8[8192]{0}', space=vmem, size = 0x2000, scoped, tag = 'output window, operand 0']
    #allocation6 [shape = 's32[2]{0}', space=sflag, size = 0x8, scoped, tag = 'scoped memory for tpu_custom_call.1']
    %21 = vsyncpa [#allocation6], 0
    %s22 = scalar_lea.sflag [#allocation6], 1
    %23 = vsyncpa %s22, 0
    loop: start=0, step=1, limit=4
    $region2: #{tpu_custom_call.1} parent=1 // loop_pre_header
      _
    $region3: #{tpu_custom_call.1} parent=1 // loop_header
      %s25 = sphi 0, %s29
      %p26 = scmp.ge.s32.totalorder %s25, 4
      %s32 = sphi 0, %s44
      %s33 = sphi 0, %s40
      %s34 = sphi 0, %s32
      %s35 = sphi 0, %s33
      %s36 = sphi 0, %s34
      %s37 = sphi 0, %s35
      %s47 = sphi 0, %s49
      %s50 = sphi 0, %s47
      %s51 = sphi 0, %s50
      %s67 = sphi 0, %s51
      %s73 = sphi 0, %s75
      %s76 = sphi 0, %s73
      %s77 = sphi 0, %s76
      %s93 = sphi 0, %s77
      %s97 = sphi 0, %s97
      %s99 = sphi 0, %s97
      %s100 = sphi 0, %s99
      %s114 = sphi 0, %s100
      %s118 = sphi 0, %s118
      %s120 = sphi 0, %s118
      %s121 = sphi 0, %s120
      %s135 = sphi 0, %s121
      %s139 = sphi 0, %s139
      %s141 = sphi 0, %s139
      %s142 = sphi 0, %s141
      %s156 = sphi 0, %s142
      %s160 = sphi 0, %s160
      %s162 = sphi 0, %s160
      %s163 = sphi 0, %s162
      %s177 = sphi 0, %s163
      %s181 = sphi 0, %s181
      %s183 = sphi 0, %s181
      %s184 = sphi 0, %s183
      %s198 = sphi 0, %s184
      %s202 = sphi 0, %s202
      %s204 = sphi 0, %s202
      %s205 = sphi 0, %s204
      %s219 = sphi 0, %s205
      %s223 = sphi 0, %s223
      %s225 = sphi 0, %s223
      %s226 = sphi 0, %s225
      %s240 = sphi 0, %s226
      %s244 = sphi 0, %s244
      %s246 = sphi 0, %s244
      %s247 = sphi 0, %s246
      %s261 = sphi 0, %s247
      %s265 = sphi 0, %s265
      %s267 = sphi 0, %s265
      %s268 = sphi 0, %s267
      %s282 = sphi 0, %s268
      %s286 = sphi 0, %s286
      %s288 = sphi 0, %s286
      %s289 = sphi 0, %s288
      %s303 = sphi 0, %s289
      %s307 = sphi 0, %s307
      %s309 = sphi 0, %s307
      %s310 = sphi 0, %s309
      %s324 = sphi 0, %s310
      %s328 = sphi 0, %s328
      %s330 = sphi 0, %s328
      %s331 = sphi 0, %s330
      %s345 = sphi 0, %s331
      %s349 = sphi 0, %s349
      %s351 = sphi 0, %s349
      %s352 = sphi 0, %s351
      %s366 = sphi 0, %s352
      %s370 = sphi 0, %s370
      %s372 = sphi 0, %s370
      %s373 = sphi 0, %s372
      %s387 = sphi 0, %s373
      %s395 = sphi 0, %s397
      %s398 = sphi 0, %s395
      %s399 = sphi 0, %s398
      %s415 = sphi 0, %s399
    $region4: #{tpu_custom_call.1} parent=1 // loop_header_branch
      %28 = sbr.rel (%p26) target = $region8
    $region5: #{tpu_custom_call.1} parent=1 // loop_body
      %s30 = ssub.s32 %s25, 1
      %s31 = ssub.s32 %s25, 2
      %s38 = sadd.s32 1, %s33
      %p39 = scmp.ge.s32.totalorder %s38, 1
      %s40 = scalar_select %p39, 0, %s38
      %s41 = sadd.s32 1, %s32
      %s42 = scalar_select %p39, %s41, %s32
      %p43 = scmp.ge.s32.totalorder %s42, 2
      %s44 = scalar_select %p43, 0, %s42
      %s45 = ssub.s32 %s32, %s44
      %p46 = scmp.eq.s32.totalorder %s45, 0
      %s48 = sadd.s32 %s47, 1
      %s49 = scalar_select %p46, %s47, %s48
      %p52 = pneg %p46
      %p53 = scmp.eq.s32.totalorder %s25, 1
      %p54 = por %p52, %p53
      %p55 = scmp.ne.s32.totalorder %s47, %s50
      %p56 = scmp.eq.s32.totalorder %s25, 0
      %p57 = por %p55, %p56
      %p58 = scmp.ne.s32.totalorder %s47, %s50
      %p59 = scmp.eq.s32.totalorder %s30, 1
      %p60 = por %p58, %p59
      %p61 = scmp.ne.s32.totalorder %s50, %s51
      %p62 = scmp.eq.s32.totalorder %s30, 0
      %p63 = por %p61, %p62
      %p64 = scmp.ne.s32.totalorder %s50, %s51
      %p65 = scmp.eq.s32.totalorder %s31, 1
      %p66 = por %p64, %p65
      %p68 = scmp.ne.s32.totalorder %s51, %s67
      %p69 = scmp.eq.s32.totalorder %s31, 0
      %p70 = por %p68, %p69
      %s71 = ssub.s32 %s32, %s44
      %p72 = scmp.eq.s32.totalorder %s71, 0
      %s74 = sadd.s32 %s73, 1
      %s75 = scalar_select %p72, %s73, %s74
      %p78 = pneg %p72
      %p79 = scmp.eq.s32.totalorder %s25, 1
      %p80 = por %p78, %p79
      %p81 = scmp.ne.s32.totalorder %s73, %s76
      %p82 = scmp.eq.s32.totalorder %s25, 0
      %p83 = por %p81, %p82
      %p84 = scmp.ne.s32.totalorder %s73, %s76
      %p85 = scmp.eq.s32.totalorder %s30, 1
      %p86 = por %p84, %p85
      %p87 = scmp.ne.s32.totalorder %s76, %s77
      %p88 = scmp.eq.s32.totalorder %s30, 0
      %p89 = por %p87, %p88
      %p90 = scmp.ne.s32.totalorder %s76, %s77
      %p91 = scmp.eq.s32.totalorder %s31, 1
      %p92 = por %p90, %p91
      %p94 = scmp.ne.s32.totalorder %s77, %s93
      %p95 = scmp.eq.s32.totalorder %s31, 0
      %p96 = por %p94, %p95
      %s98 = sadd.s32 %s97, 1
      %p101 = scmp.eq.s32.totalorder %s25, 1
      %p102 = scmp.ne.s32.totalorder %s97, %s99
      %p103 = scmp.eq.s32.totalorder %s25, 0
      %p104 = por %p102, %p103
      %p105 = scmp.ne.s32.totalorder %s97, %s99
      %p106 = scmp.eq.s32.totalorder %s30, 1
      %p107 = por %p105, %p106
      %p108 = scmp.ne.s32.totalorder %s99, %s100
      %p109 = scmp.eq.s32.totalorder %s30, 0
      %p110 = por %p108, %p109
      %p111 = scmp.ne.s32.totalorder %s99, %s100
      %p112 = scmp.eq.s32.totalorder %s31, 1
      %p113 = por %p111, %p112
      %p115 = scmp.ne.s32.totalorder %s100, %s114
      %p116 = scmp.eq.s32.totalorder %s31, 0
      %p117 = por %p115, %p116
      %s119 = sadd.s32 %s118, 1
      %p122 = scmp.eq.s32.totalorder %s25, 1
      %p123 = scmp.ne.s32.totalorder %s118, %s120
      %p124 = scmp.eq.s32.totalorder %s25, 0
      %p125 = por %p123, %p124
      %p126 = scmp.ne.s32.totalorder %s118, %s120
      %p127 = scmp.eq.s32.totalorder %s30, 1
      %p128 = por %p126, %p127
      %p129 = scmp.ne.s32.totalorder %s120, %s121
      %p130 = scmp.eq.s32.totalorder %s30, 0
      %p131 = por %p129, %p130
      %p132 = scmp.ne.s32.totalorder %s120, %s121
      %p133 = scmp.eq.s32.totalorder %s31, 1
      %p134 = por %p132, %p133
      %p136 = scmp.ne.s32.totalorder %s121, %s135
      %p137 = scmp.eq.s32.totalorder %s31, 0
      %p138 = por %p136, %p137
      %s140 = sadd.s32 %s139, 1
      %p143 = scmp.eq.s32.totalorder %s25, 1
      %p144 = scmp.ne.s32.totalorder %s139, %s141
      %p145 = scmp.eq.s32.totalorder %s25, 0
      %p146 = por %p144, %p145
      %p147 = scmp.ne.s32.totalorder %s139, %s141
      %p148 = scmp.eq.s32.totalorder %s30, 1
      %p149 = por %p147, %p148
      %p150 = scmp.ne.s32.totalorder %s141, %s142
      %p151 = scmp.eq.s32.totalorder %s30, 0
      %p152 = por %p150, %p151
      %p153 = scmp.ne.s32.totalorder %s141, %s142
      %p154 = scmp.eq.s32.totalorder %s31, 1
      %p155 = por %p153, %p154
      %p157 = scmp.ne.s32.totalorder %s142, %s156
      %p158 = scmp.eq.s32.totalorder %s31, 0
      %p159 = por %p157, %p158
      %s161 = sadd.s32 %s160, 1
      %p164 = scmp.eq.s32.totalorder %s25, 1
      %p165 = scmp.ne.s32.totalorder %s160, %s162
      %p166 = scmp.eq.s32.totalorder %s25, 0
      %p167 = por %p165, %p166
      %p168 = scmp.ne.s32.totalorder %s160, %s162
      %p169 = scmp.eq.s32.totalorder %s30, 1
      %p170 = por %p168, %p169
      %p171 = scmp.ne.s32.totalorder %s162, %s163
      %p172 = scmp.eq.s32.totalorder %s30, 0
      %p173 = por %p171, %p172
      %p174 = scmp.ne.s32.totalorder %s162, %s163
      %p175 = scmp.eq.s32.totalorder %s31, 1
      %p176 = por %p174, %p175
      %p178 = scmp.ne.s32.totalorder %s163, %s177
      %p179 = scmp.eq.s32.totalorder %s31, 0
      %p180 = por %p178, %p179
      %s182 = sadd.s32 %s181, 1
      %p185 = scmp.eq.s32.totalorder %s25, 1
      %p186 = scmp.ne.s32.totalorder %s181, %s183
      %p187 = scmp.eq.s32.totalorder %s25, 0
      %p188 = por %p186, %p187
      %p189 = scmp.ne.s32.totalorder %s181, %s183
      %p190 = scmp.eq.s32.totalorder %s30, 1
      %p191 = por %p189, %p190
      %p192 = scmp.ne.s32.totalorder %s183, %s184
      %p193 = scmp.eq.s32.totalorder %s30, 0
      %p194 = por %p192, %p193
      %p195 = scmp.ne.s32.totalorder %s183, %s184
      %p196 = scmp.eq.s32.totalorder %s31, 1
      %p197 = por %p195, %p196
      %p199 = scmp.ne.s32.totalorder %s184, %s198
      %p200 = scmp.eq.s32.totalorder %s31, 0
      %p201 = por %p199, %p200
      %s203 = sadd.s32 %s202, 1
      %p206 = scmp.eq.s32.totalorder %s25, 1
      %p207 = scmp.ne.s32.totalorder %s202, %s204
      %p208 = scmp.eq.s32.totalorder %s25, 0
      %p209 = por %p207, %p208
      %p210 = scmp.ne.s32.totalorder %s202, %s204
      %p211 = scmp.eq.s32.totalorder %s30, 1
      %p212 = por %p210, %p211
      %p213 = scmp.ne.s32.totalorder %s204, %s205
      %p214 = scmp.eq.s32.totalorder %s30, 0
      %p215 = por %p213, %p214
      %p216 = scmp.ne.s32.totalorder %s204, %s205
      %p217 = scmp.eq.s32.totalorder %s31, 1
      %p218 = por %p216, %p217
      %p220 = scmp.ne.s32.totalorder %s205, %s219
      %p221 = scmp.eq.s32.totalorder %s31, 0
      %p222 = por %p220, %p221
      %s224 = sadd.s32 %s223, 1
      %p227 = scmp.eq.s32.totalorder %s25, 1
      %p228 = scmp.ne.s32.totalorder %s223, %s225
      %p229 = scmp.eq.s32.totalorder %s25, 0
      %p230 = por %p228, %p229
      %p231 = scmp.ne.s32.totalorder %s223, %s225
      %p232 = scmp.eq.s32.totalorder %s30, 1
      %p233 = por %p231, %p232
      %p234 = scmp.ne.s32.totalorder %s225, %s226
      %p235 = scmp.eq.s32.totalorder %s30, 0
      %p236 = por %p234, %p235
      %p237 = scmp.ne.s32.totalorder %s225, %s226
      %p238 = scmp.eq.s32.totalorder %s31, 1
      %p239 = por %p237, %p238
      %p241 = scmp.ne.s32.totalorder %s226, %s240
      %p242 = scmp.eq.s32.totalorder %s31, 0
      %p243 = por %p241, %p242
      %s245 = sadd.s32 %s244, 1
      %p248 = scmp.eq.s32.totalorder %s25, 1
      %p249 = scmp.ne.s32.totalorder %s244, %s246
      %p250 = scmp.eq.s32.totalorder %s25, 0
      %p251 = por %p249, %p250
      %p252 = scmp.ne.s32.totalorder %s244, %s246
      %p253 = scmp.eq.s32.totalorder %s30, 1
      %p254 = por %p252, %p253
      %p255 = scmp.ne.s32.totalorder %s246, %s247
      %p256 = scmp.eq.s32.totalorder %s30, 0
      %p257 = por %p255, %p256
      %p258 = scmp.ne.s32.totalorder %s246, %s247
      %p259 = scmp.eq.s32.totalorder %s31, 1
      %p260 = por %p258, %p259
      %p262 = scmp.ne.s32.totalorder %s247, %s261
      %p263 = scmp.eq.s32.totalorder %s31, 0
      %p264 = por %p262, %p263
      %s266 = sadd.s32 %s265, 1
      %p269 = scmp.eq.s32.totalorder %s25, 1
      %p270 = scmp.ne.s32.totalorder %s265, %s267
      %p271 = scmp.eq.s32.totalorder %s25, 0
      %p272 = por %p270, %p271
      %p273 = scmp.ne.s32.totalorder %s265, %s267
      %p274 = scmp.eq.s32.totalorder %s30, 1
      %p275 = por %p273, %p274
      %p276 = scmp.ne.s32.totalorder %s267, %s268
      %p277 = scmp.eq.s32.totalorder %s30, 0
      %p278 = por %p276, %p277
      %p279 = scmp.ne.s32.totalorder %s267, %s268
      %p280 = scmp.eq.s32.totalorder %s31, 1
      %p281 = por %p279, %p280
      %p283 = scmp.ne.s32.totalorder %s268, %s282
      %p284 = scmp.eq.s32.totalorder %s31, 0
      %p285 = por %p283, %p284
      %s287 = sadd.s32 %s286, 1
      %p290 = scmp.eq.s32.totalorder %s25, 1
      %p291 = scmp.ne.s32.totalorder %s286, %s288
      %p292 = scmp.eq.s32.totalorder %s25, 0
      %p293 = por %p291, %p292
      %p294 = scmp.ne.s32.totalorder %s286, %s288
      %p295 = scmp.eq.s32.totalorder %s30, 1
      %p296 = por %p294, %p295
      %p297 = scmp.ne.s32.totalorder %s288, %s289
      %p298 = scmp.eq.s32.totalorder %s30, 0
      %p299 = por %p297, %p298
      %p300 = scmp.ne.s32.totalorder %s288, %s289
      %p301 = scmp.eq.s32.totalorder %s31, 1
      %p302 = por %p300, %p301
      %p304 = scmp.ne.s32.totalorder %s289, %s303
      %p305 = scmp.eq.s32.totalorder %s31, 0
      %p306 = por %p304, %p305
      %s308 = sadd.s32 %s307, 1
      %p311 = scmp.eq.s32.totalorder %s25, 1
      %p312 = scmp.ne.s32.totalorder %s307, %s309
      %p313 = scmp.eq.s32.totalorder %s25, 0
      %p314 = por %p312, %p313
      %p315 = scmp.ne.s32.totalorder %s307, %s309
      %p316 = scmp.eq.s32.totalorder %s30, 1
      %p317 = por %p315, %p316
      %p318 = scmp.ne.s32.totalorder %s309, %s310
      %p319 = scmp.eq.s32.totalorder %s30, 0
      %p320 = por %p318, %p319
      %p321 = scmp.ne.s32.totalorder %s309, %s310
      %p322 = scmp.eq.s32.totalorder %s31, 1
      %p323 = por %p321, %p322
      %p325 = scmp.ne.s32.totalorder %s310, %s324
      %p326 = scmp.eq.s32.totalorder %s31, 0
      %p327 = por %p325, %p326
      %s329 = sadd.s32 %s328, 1
      %p332 = scmp.eq.s32.totalorder %s25, 1
      %p333 = scmp.ne.s32.totalorder %s328, %s330
      %p334 = scmp.eq.s32.totalorder %s25, 0
      %p335 = por %p333, %p334
      %p336 = scmp.ne.s32.totalorder %s328, %s330
      %p337 = scmp.eq.s32.totalorder %s30, 1
      %p338 = por %p336, %p337
      %p339 = scmp.ne.s32.totalorder %s330, %s331
      %p340 = scmp.eq.s32.totalorder %s30, 0
      %p341 = por %p339, %p340
      %p342 = scmp.ne.s32.totalorder %s330, %s331
      %p343 = scmp.eq.s32.totalorder %s31, 1
      %p344 = por %p342, %p343
      %p346 = scmp.ne.s32.totalorder %s331, %s345
      %p347 = scmp.eq.s32.totalorder %s31, 0
      %p348 = por %p346, %p347
      %s350 = sadd.s32 %s349, 1
      %p353 = scmp.eq.s32.totalorder %s25, 1
      %p354 = scmp.ne.s32.totalorder %s349, %s351
      %p355 = scmp.eq.s32.totalorder %s25, 0
      %p356 = por %p354, %p355
      %p357 = scmp.ne.s32.totalorder %s349, %s351
      %p358 = scmp.eq.s32.totalorder %s30, 1
      %p359 = por %p357, %p358
      %p360 = scmp.ne.s32.totalorder %s351, %s352
      %p361 = scmp.eq.s32.totalorder %s30, 0
      %p362 = por %p360, %p361
      %p363 = scmp.ne.s32.totalorder %s351, %s352
      %p364 = scmp.eq.s32.totalorder %s31, 1
      %p365 = por %p363, %p364
      %p367 = scmp.ne.s32.totalorder %s352, %s366
      %p368 = scmp.eq.s32.totalorder %s31, 0
      %p369 = por %p367, %p368
      %s371 = sadd.s32 %s370, 1
      %p374 = scmp.eq.s32.totalorder %s25, 1
      %p375 = scmp.ne.s32.totalorder %s370, %s372
      %p376 = scmp.eq.s32.totalorder %s25, 0
      %p377 = por %p375, %p376
      %p378 = scmp.ne.s32.totalorder %s370, %s372
      %p379 = scmp.eq.s32.totalorder %s30, 1
      %p380 = por %p378, %p379
      %p381 = scmp.ne.s32.totalorder %s372, %s373
      %p382 = scmp.eq.s32.totalorder %s30, 0
      %p383 = por %p381, %p382
      %p384 = scmp.ne.s32.totalorder %s372, %s373
      %p385 = scmp.eq.s32.totalorder %s31, 1
      %p386 = por %p384, %p385
      %p388 = scmp.ne.s32.totalorder %s373, %s387
      %p389 = scmp.eq.s32.totalorder %s31, 0
      %p390 = por %p388, %p389
      %s391 = ssub.s32 %s32, %s44
      %s392 = ssub.s32 %s33, %s40
      %s393 = sor.u32 %s391, %s392
      %p394 = scmp.eq.s32.totalorder %s393, 0
      %s396 = sadd.s32 %s395, 1
      %s397 = scalar_select %p394, %s395, %s396
      %p400 = pneg %p394
      %p401 = scmp.eq.s32.totalorder %s25, 1
      %p402 = por %p400, %p401
      %p403 = scmp.ne.s32.totalorder %s395, %s398
      %p404 = scmp.eq.s32.totalorder %s25, 0
      %p405 = por %p403, %p404
      %p406 = scmp.ne.s32.totalorder %s395, %s398
      %p407 = scmp.eq.s32.totalorder %s30, 1
      %p408 = por %p406, %p407
      %p409 = scmp.ne.s32.totalorder %s398, %s399
      %p410 = scmp.eq.s32.totalorder %s30, 0
      %p411 = por %p409, %p410
      %p412 = scmp.ne.s32.totalorder %s398, %s399
      %p413 = scmp.eq.s32.totalorder %s31, 1
      %p414 = por %p412, %p413
      %p416 = scmp.ne.s32.totalorder %s399, %s415
      %p417 = scmp.eq.s32.totalorder %s31, 0
      %p418 = por %p416, %p417
      %p419 = scmp.le.s32.totalorder 1, %s25
      %p420 = scmp.lt.s32.totalorder %s25, 3
      %p421 = pnand %p419, %p420
      %p422 = pneg %p421
      // Predicated region
      $region9: #{tpu_custom_call.1} parent=5 // pred_check
        _
      $region10: #{tpu_custom_call.1} parent=5 // pred_check_branch
        %424 = sbr.rel (%p421) target = $region12
      $region11: #{tpu_custom_call.1} parent=5 // pred_region
        %s425 = ssub.s32 %s25, 1
        // Predicated region
        $region13: #{tpu_custom_call.1} parent=11 // pred_check
          %p426 = pneg %p110
        $region14: #{tpu_custom_call.1} parent=11 // pred_check_branch
          %428 = sbr.rel (%p426) target = $region16
        $region15: #{tpu_custom_call.1} parent=11 // pred_region
          _
        $region16: #{tpu_custom_call.1} parent=11 // pred_fallthru
          _
        // Predicated region
        $region17: #{tpu_custom_call.1} parent=11 // pred_check
          %p429 = pneg %p131
        $region18: #{tpu_custom_call.1} parent=11 // pred_check_branch
          %431 = sbr.rel (%p429) target = $region20
        $region19: #{tpu_custom_call.1} parent=11 // pred_region
          _
        $region20: #{tpu_custom_call.1} parent=11 // pred_fallthru
          _
        // Predicated region
        $region21: #{tpu_custom_call.1} parent=11 // pred_check
          %p432 = pneg %p152
        $region22: #{tpu_custom_call.1} parent=11 // pred_check_branch
          %434 = sbr.rel (%p432) target = $region24
        $region23: #{tpu_custom_call.1} parent=11 // pred_region
          _
        $region24: #{tpu_custom_call.1} parent=11 // pred_fallthru
          _
        // Predicated region
        $region25: #{tpu_custom_call.1} parent=11 // pred_check
          %p435 = pneg %p173
        $region26: #{tpu_custom_call.1} parent=11 // pred_check_branch
          %437 = sbr.rel (%p435) target = $region28
        $region27: #{tpu_custom_call.1} parent=11 // pred_region
          _
        $region28: #{tpu_custom_call.1} parent=11 // pred_fallthru
          _
        // Predicated region
        $region29: #{tpu_custom_call.1} parent=11 // pred_check
          %p438 = pneg %p194
        $region30: #{tpu_custom_call.1} parent=11 // pred_check_branch
          %440 = sbr.rel (%p438) target = $region32
        $region31: #{tpu_custom_call.1} parent=11 // pred_region
          _
        $region32: #{tpu_custom_call.1} parent=11 // pred_fallthru
          _
        // Predicated region
        $region33: #{tpu_custom_call.1} parent=11 // pred_check
          %p441 = pneg %p215
        $region34: #{tpu_custom_call.1} parent=11 // pred_check_branch
          %443 = sbr.rel (%p441) target = $region36
        $region35: #{tpu_custom_call.1} parent=11 // pred_region
          _
        $region36: #{tpu_custom_call.1} parent=11 // pred_fallthru
          _
        // Predicated region
        $region37: #{tpu_custom_call.1} parent=11 // pred_check
          %p444 = pneg %p236
        $region38: #{tpu_custom_call.1} parent=11 // pred_check_branch
          %446 = sbr.rel (%p444) target = $region40
        $region39: #{tpu_custom_call.1} parent=11 // pred_region
          _
        $region40: #{tpu_custom_call.1} parent=11 // pred_fallthru
          _
        // Predicated region
        $region41: #{tpu_custom_call.1} parent=11 // pred_check
          %p447 = pneg %p257
        $region42: #{tpu_custom_call.1} parent=11 // pred_check_branch
          %449 = sbr.rel (%p447) target = $region44
        $region43: #{tpu_custom_call.1} parent=11 // pred_region
          _
        $region44: #{tpu_custom_call.1} parent=11 // pred_fallthru
          _
        // Predicated region
        $region45: #{tpu_custom_call.1} parent=11 // pred_check
          %p450 = pneg %p278
        $region46: #{tpu_custom_call.1} parent=11 // pred_check_branch
          %452 = sbr.rel (%p450) target = $region48
        $region47: #{tpu_custom_call.1} parent=11 // pred_region
          _
        $region48: #{tpu_custom_call.1} parent=11 // pred_fallthru
          _
        // Predicated region
        $region49: #{tpu_custom_call.1} parent=11 // pred_check
          %p453 = pneg %p299
        $region50: #{tpu_custom_call.1} parent=11 // pred_check_branch
          %455 = sbr.rel (%p453) target = $region52
        $region51: #{tpu_custom_call.1} parent=11 // pred_region
          _
        $region52: #{tpu_custom_call.1} parent=11 // pred_fallthru
          _
        // Predicated region
        $region53: #{tpu_custom_call.1} parent=11 // pred_check
          %p456 = pneg %p320
        $region54: #{tpu_custom_call.1} parent=11 // pred_check_branch
          %458 = sbr.rel (%p456) target = $region56
        $region55: #{tpu_custom_call.1} parent=11 // pred_region
          _
        $region56: #{tpu_custom_call.1} parent=11 // pred_fallthru
          _
        // Predicated region
        $region57: #{tpu_custom_call.1} parent=11 // pred_check
          %p459 = pneg %p341
        $region58: #{tpu_custom_call.1} parent=11 // pred_check_branch
          %461 = sbr.rel (%p459) target = $region60
        $region59: #{tpu_custom_call.1} parent=11 // pred_region
          _
        $region60: #{tpu_custom_call.1} parent=11 // pred_fallthru
          _
        // Predicated region
        $region61: #{tpu_custom_call.1} parent=11 // pred_check
          %p462 = pneg %p362
        $region62: #{tpu_custom_call.1} parent=11 // pred_check_branch
          %464 = sbr.rel (%p462) target = $region64
        $region63: #{tpu_custom_call.1} parent=11 // pred_region
          _
        $region64: #{tpu_custom_call.1} parent=11 // pred_fallthru
          _
        // Predicated region
        $region65: #{tpu_custom_call.1} parent=11 // pred_check
          %p465 = pneg %p383
        $region66: #{tpu_custom_call.1} parent=11 // pred_check_branch
          %467 = sbr.rel (%p465) target = $region68
        $region67: #{tpu_custom_call.1} parent=11 // pred_region
          _
        $region68: #{tpu_custom_call.1} parent=11 // pred_fallthru
          _
      $region12: #{tpu_custom_call.1} parent=5 // pred_fallthru
        _
      %p468 = scmp.lt.s32.totalorder %s25, 2
      // Predicated region
      $region69: #{tpu_custom_call.1} parent=5 // pred_check
        %p469 = pneg %p468
      $region70: #{tpu_custom_call.1} parent=5 // pred_check_branch
        %471 = sbr.rel (%p469) target = $region72
      $region71: #{tpu_custom_call.1} parent=5 // pred_region
        // Predicated region
        $region73: #{tpu_custom_call.1} parent=71 // pred_check
          %p472 = pneg %p57
        $region74: #{tpu_custom_call.1} parent=71 // pred_check_branch
          %474 = sbr.rel (%p472) target = $region76
        $region75: #{tpu_custom_call.1} parent=71 // pred_region
          %p475 = scmp.lt.s32.totalorder %s32, 1
          %s476 = scalar_select %p475, %s32, 1
          %s477 = smul.addr %s476, 8
          %s478 = scalar_lea.vmem %s0, %s477
        $region76: #{tpu_custom_call.1} parent=71 // pred_fallthru
          _
        // Predicated region
        $region77: #{tpu_custom_call.1} parent=71 // pred_check
          %p479 = pneg %p83
        $region78: #{tpu_custom_call.1} parent=71 // pred_check_branch
          %481 = sbr.rel (%p479) target = $region80
        $region79: #{tpu_custom_call.1} parent=71 // pred_region
          %p482 = scmp.lt.s32.totalorder %s32, 1
          %s483 = scalar_select %p482, %s32, 1
          %s484 = scalar_lea.vmem %s1, %s483
        $region80: #{tpu_custom_call.1} parent=71 // pred_fallthru
          _
      $region72: #{tpu_custom_call.1} parent=5 // pred_fallthru
        _
      %p485 = scmp.le.s32.totalorder 1, %s25
      %p486 = scmp.lt.s32.totalorder %s25, 3
      %p487 = pnand %p485, %p486
      %p488 = pneg %p487
      // Predicated region
      $region81: #{tpu_custom_call.1} parent=5 // pred_check
        _
      $region82: #{tpu_custom_call.1} parent=5 // pred_check_branch
        %490 = sbr.rel (%p487) target = $region84
      $region83: #{tpu_custom_call.1} parent=5 // pred_region
        %s491 = ssub.s32 %s25, 1
        %p492 = scmp.lt.s32.totalorder %s34, 1
        %s493 = scalar_select %p492, %s34, 1
        %s494 = smul.addr %s493, 8
        %s495 = scalar_lea.vmem %s0, %s494
        %p496 = pneg %p63
        %p497 = pneg %p60
        %p498 = scmp.lt.s32.totalorder %s34, 1
        %s499 = scalar_select %p498, %s34, 1
        %s500 = scalar_lea.vmem %s1, %s499
        %p501 = pneg %p89
        %p502 = pneg %p86
        %p503 = pneg %p110
        %p504 = pneg %p107
        %p505 = pneg %p131
        %p506 = pneg %p128
        %p507 = pneg %p152
        %p508 = pneg %p149
        %p509 = pneg %p173
        %p510 = pneg %p170
        %p511 = pneg %p194
        %p512 = pneg %p191
        %p513 = pneg %p215
        %p514 = pneg %p212
        %p515 = pneg %p236
        %p516 = pneg %p233
        %p517 = pneg %p257
        %p518 = pneg %p254
        %p519 = pneg %p278
        %p520 = pneg %p275
        %p521 = pneg %p299
        %p522 = pneg %p296
        %p523 = pneg %p320
        %p524 = pneg %p317
        %p525 = pneg %p341
        %p526 = pneg %p338
        %p527 = pneg %p362
        %p528 = pneg %p359
        %p529 = pneg %p383
        %p530 = pneg %p380
        %p531 = pneg %p411
        %p532 = pneg %p408
        %s533 = sand.u32 %s398, 1
        %s534 = scalar_lea.sflag [#allocation6], %s533
        %s535 = sand.u32 %s398, 1
        %s536 = smul.addr %s535, 8
        %s537 = scalar_lea.vmem [#allocation5], %s536
        %p538 = scmp.lt.s32.totalorder %s34, 1
        %s539 = scalar_select %p538, %s34, 1
        %s540 = smul.addr %s539, 8
        %s541 = scalar_lea.vmem %s0, %s540
        %p542 = scmp.lt.s32.totalorder %s34, 1
        %s543 = scalar_select %p542, %s34, 1
        %s544 = scalar_lea.vmem %s1, %s543
        %p546 = scmp.eq.s32.totalorder %s35, 0
        // Predicated region
        $region85: #{tpu_custom_call.1} parent=83 // pred_check
          %p547 = pneg %p546
        $region86: #{tpu_custom_call.1} parent=83 // pred_check_branch
          %549 = sbr.rel (%p547) target = $region88
        $region87: #{tpu_custom_call.1} parent=83 // pred_region
          %v550 = vld [vmem:[%s541] sm:$0xff]
          %v551 = vpack.c.bf16 %v550, %v550
          %v552 = vld [vmem:[%s4] sm:$0xf]
          %v553 = vld [vmem:[%s4 + $0x4] sm:$0xf]
          %v554 = vld [vmem:[%s4 + $0x8] sm:$0xf]
          %v555 = vld [vmem:[%s4 + $0xc] sm:$0xf]
          %v556 = vld [vmem:[%s5] sm:$0x1]
          %v558 = vlaneseq
          %v559 = vshrl.u32 %v558, 7
          %v560 = vsub.s32 0, %v559
          %v561 = vrot.slane %v556, %v560
          %v567 = vunpack.c.l.b16 %v552
          %v568 = vunpack.c.l.b16 %v553
          %v569 = vunpack.c.l.b16 %v554
          %v570 = vunpack.c.l.b16 %v555
          %v571 = vpack.c.b16 %v568, %v567
          %v572 = vpack.c.b16 %v570, %v569
          %vm575 = vcmask 261120
          %v577 = vsel %vm575, %v551, 0
          %579 = vmatprep.subr.bf16.mxu0 0
          %580 = vmatpush1.bf16.msra.mxu0 0
          %581 = vmatprep.subr.bf16.mxu0 0
          %582 = vmatpush1.bf16.msra.mxu0 0
          %583 = vmatprep.subr.bf16.mxu0 0
          %584 = vmatpush1.bf16.msra.mxu0 0
          %585 = vmatprep.subr.bf16.mxu0 0
          %586 = vmatpush1.bf16.msra.mxu0 0
          %587 = vmatprep.subr.bf16.mxu0 0
          %588 = vmatpush1.bf16.msra.mxu0 0
          %589 = vmatprep.subr.bf16.mxu0 0
          %590 = vmatpush1.bf16.msra.mxu0 0
          %591 = vmatprep.subr.bf16.mxu0 0
          %592 = vmatpush1.bf16.msra.mxu0 %v572
          %593 = vmatprep.subr.bf16.mxu0 0
          %594 = vmatpush1.bf16.msra.mxu0 %v571
          %595 = vmatprep.subr.bf16.mxu0 0
          %596 = vmatpush2.bf16.msra.mxu0 0
          %597 = vmatprep.subr.bf16.mxu0 0
          %598 = vmatpush2.bf16.msra.mxu0 0
          %599 = vmatprep.subr.bf16.mxu0 0
          %600 = vmatpush2.bf16.msra.mxu0 0
          %601 = vmatprep.subr.bf16.mxu0 0
          %602 = vmatpush2.bf16.msra.mxu0 0
          %603 = vmatprep.subr.bf16.mxu0 0
          %604 = vmatpush2.bf16.msra.mxu0 0
          %605 = vmatprep.subr.bf16.mxu0 0
          %606 = vmatpush2.bf16.msra.mxu0 0
          %607 = vmatprep.subr.bf16.mxu0 0
          %608 = vmatpush2.bf16.msra.mxu0 0
          %609 = vmatprep.subr.bf16.mxu0 0
          %610 = vmatpush2.bf16.msra.mxu0 0
          %611 = vmatprep.mubr.bf16.mxu0 0
          %612 = vmatmul.mubr.bf16.gmra.mxu0 %v577
          %v613 = vpop.f32.mrf.mxu0
          %v614 = vadd.f32 %v561, %v613
          %v615 = vpop.f32.mrf.mxu0
          %v616 = vpop.f32.mrf.mxu0
          %v617 = vpop.f32.mrf.mxu0
          %618 = vdwg.mxu0
          %v619 = vld [vmem:[%s6] sm:$0xf]
          %v620 = vld [vmem:[%s6 + $0x4] sm:$0xf]
          %v621 = vld [vmem:[%s6 + $0x8] sm:$0xf]
          %v622 = vld [vmem:[%s6 + $0xc] sm:$0xf]
          %v623 = vld [vmem:[%s7] sm:$0x1]
          %v625 = vlaneseq
          %v626 = vshrl.u32 %v625, 7
          %v627 = vsub.s32 0, %v626
          %v628 = vrot.slane %v623, %v627
          %v634 = vunpack.c.l.b16 %v619
          %v635 = vunpack.c.l.b16 %v620
          %v636 = vunpack.c.l.b16 %v621
          %v637 = vunpack.c.l.b16 %v622
          %v638 = vpack.c.b16 %v635, %v634
          %v639 = vpack.c.b16 %v637, %v636
          %642 = vmatprep.subr.bf16.mxu0 0
          %643 = vmatpush1.bf16.msra.mxu0 0
          %644 = vmatprep.subr.bf16.mxu0 0
          %645 = vmatpush1.bf16.msra.mxu0 0
          %646 = vmatprep.subr.bf16.mxu0 0
          %647 = vmatpush1.bf16.msra.mxu0 0
          %648 = vmatprep.subr.bf16.mxu0 0
          %649 = vmatpush1.bf16.msra.mxu0 0
          %650 = vmatprep.subr.bf16.mxu0 0
          %651 = vmatpush1.bf16.msra.mxu0 0
          %652 = vmatprep.subr.bf16.mxu0 0
          %653 = vmatpush1.bf16.msra.mxu0 0
          %654 = vmatprep.subr.bf16.mxu0 0
          %655 = vmatpush1.bf16.msra.mxu0 %v639
          %656 = vmatprep.subr.bf16.mxu0 0
          %657 = vmatpush1.bf16.msra.mxu0 %v638
          %658 = vmatprep.subr.bf16.mxu0 0
          %659 = vmatpush2.bf16.msra.mxu0 0
          %660 = vmatprep.subr.bf16.mxu0 0
          %661 = vmatpush2.bf16.msra.mxu0 0
          %662 = vmatprep.subr.bf16.mxu0 0
          %663 = vmatpush2.bf16.msra.mxu0 0
          %664 = vmatprep.subr.bf16.mxu0 0
          %665 = vmatpush2.bf16.msra.mxu0 0
          %666 = vmatprep.subr.bf16.mxu0 0
          %667 = vmatpush2.bf16.msra.mxu0 0
          %668 = vmatprep.subr.bf16.mxu0 0
          %669 = vmatpush2.bf16.msra.mxu0 0
          %670 = vmatprep.subr.bf16.mxu0 0
          %671 = vmatpush2.bf16.msra.mxu0 0
          %672 = vmatprep.subr.bf16.mxu0 0
          %673 = vmatpush2.bf16.msra.mxu0 0
          %674 = vmatprep.mubr.bf16.mxu0 0
          %675 = vmatmul.mubr.bf16.gmra.mxu0 %v577
          %v676 = vpop.f32.mrf.mxu0
          %v677 = vadd.f32 %v628, %v676
          %v678 = vpop.f32.mrf.mxu0
          %v679 = vpop.f32.mrf.mxu0
          %v680 = vpop.f32.mrf.mxu0
          %681 = vdwg.mxu0
          %v682 = vpack.c.bf16 %v614, %v614
          %vm683 = vcmask 60416
          %684 = vst.msk [vmem:[#allocation2] sm:$0xf] %vm683, %v682
          %v685 = vpack.c.bf16 %v677, %v677
          %686 = vst.msk [vmem:[#allocation3] sm:$0xf] %vm683, %v685
          %s687 = scalar_lea.vmem %s4, 16
          %v688 = vld [vmem:[%s687] sm:$0xf]
          %v689 = vld [vmem:[%s687 + $0x4] sm:$0xf]
          %v690 = vld [vmem:[%s687 + $0x8] sm:$0xf]
          %v691 = vld [vmem:[%s687 + $0xc] sm:$0xf]
          %s692 = scalar_lea.vmem %s5, 1
          %v693 = vld [vmem:[%s692] sm:$0x1]
          %v695 = vlaneseq
          %v696 = vshrl.u32 %v695, 7
          %v697 = vsub.s32 0, %v696
          %v698 = vrot.slane %v693, %v697
          %v704 = vunpack.c.l.b16 %v688
          %v705 = vunpack.c.l.b16 %v689
          %v706 = vunpack.c.l.b16 %v690
          %v707 = vunpack.c.l.b16 %v691
          %v708 = vpack.c.b16 %v705, %v704
          %v709 = vpack.c.b16 %v707, %v706
          %712 = vmatprep.subr.bf16.mxu0 0
          %713 = vmatpush1.bf16.msra.mxu0 0
          %714 = vmatprep.subr.bf16.mxu0 0
          %715 = vmatpush1.bf16.msra.mxu0 0
          %716 = vmatprep.subr.bf16.mxu0 0
          %717 = vmatpush1.bf16.msra.mxu0 0
          %718 = vmatprep.subr.bf16.mxu0 0
          %719 = vmatpush1.bf16.msra.mxu0 0
          %720 = vmatprep.subr.bf16.mxu0 0
          %721 = vmatpush1.bf16.msra.mxu0 0
          %722 = vmatprep.subr.bf16.mxu0 0
          %723 = vmatpush1.bf16.msra.mxu0 0
          %724 = vmatprep.subr.bf16.mxu0 0
          %725 = vmatpush1.bf16.msra.mxu0 %v709
          %726 = vmatprep.subr.bf16.mxu0 0
          %727 = vmatpush1.bf16.msra.mxu0 %v708
          %728 = vmatprep.subr.bf16.mxu0 0
          %729 = vmatpush2.bf16.msra.mxu0 0
          %730 = vmatprep.subr.bf16.mxu0 0
          %731 = vmatpush2.bf16.msra.mxu0 0
          %732 = vmatprep.subr.bf16.mxu0 0
          %733 = vmatpush2.bf16.msra.mxu0 0
          %734 = vmatprep.subr.bf16.mxu0 0
          %735 = vmatpush2.bf16.msra.mxu0 0
          %736 = vmatprep.subr.bf16.mxu0 0
          %737 = vmatpush2.bf16.msra.mxu0 0
          %738 = vmatprep.subr.bf16.mxu0 0
          %739 = vmatpush2.bf16.msra.mxu0 0
          %740 = vmatprep.subr.bf16.mxu0 0
          %741 = vmatpush2.bf16.msra.mxu0 0
          %742 = vmatprep.subr.bf16.mxu0 0
          %743 = vmatpush2.bf16.msra.mxu0 0
          %744 = vmatprep.mubr.bf16.mxu0 0
          %745 = vmatmul.mubr.bf16.gmra.mxu0 %v577
          %v746 = vpop.f32.mrf.mxu0
          %v747 = vadd.f32 %v698, %v746
          %v748 = vpop.f32.mrf.mxu0
          %v749 = vpop.f32.mrf.mxu0
          %v750 = vpop.f32.mrf.mxu0
          %751 = vdwg.mxu0
          %s752 = scalar_lea.vmem %s6, 16
          %v753 = vld [vmem:[%s752] sm:$0xf]
          %v754 = vld [vmem:[%s752 + $0x4] sm:$0xf]
          %v755 = vld [vmem:[%s752 + $0x8] sm:$0xf]
          %v756 = vld [vmem:[%s752 + $0xc] sm:$0xf]
          %s757 = scalar_lea.vmem %s7, 1
          %v758 = vld [vmem:[%s757] sm:$0x1]
          %v760 = vlaneseq
          %v761 = vshrl.u32 %v760, 7
          %v762 = vsub.s32 0, %v761
          %v763 = vrot.slane %v758, %v762
          %v769 = vunpack.c.l.b16 %v753
          %v770 = vunpack.c.l.b16 %v754
          %v771 = vunpack.c.l.b16 %v755
          %v772 = vunpack.c.l.b16 %v756
          %v773 = vpack.c.b16 %v770, %v769
          %v774 = vpack.c.b16 %v772, %v771
          %777 = vmatprep.subr.bf16.mxu0 0
          %778 = vmatpush1.bf16.msra.mxu0 0
          %779 = vmatprep.subr.bf16.mxu0 0
          %780 = vmatpush1.bf16.msra.mxu0 0
          %781 = vmatprep.subr.bf16.mxu0 0
          %782 = vmatpush1.bf16.msra.mxu0 0
          %783 = vmatprep.subr.bf16.mxu0 0
          %784 = vmatpush1.bf16.msra.mxu0 0
          %785 = vmatprep.subr.bf16.mxu0 0
          %786 = vmatpush1.bf16.msra.mxu0 0
          %787 = vmatprep.subr.bf16.mxu0 0
          %788 = vmatpush1.bf16.msra.mxu0 0
          %789 = vmatprep.subr.bf16.mxu0 0
          %790 = vmatpush1.bf16.msra.mxu0 %v774
          %791 = vmatprep.subr.bf16.mxu0 0
          %792 = vmatpush1.bf16.msra.mxu0 %v773
          %793 = vmatprep.subr.bf16.mxu0 0
          %794 = vmatpush2.bf16.msra.mxu0 0
          %795 = vmatprep.subr.bf16.mxu0 0
          %796 = vmatpush2.bf16.msra.mxu0 0
          %797 = vmatprep.subr.bf16.mxu0 0
          %798 = vmatpush2.bf16.msra.mxu0 0
          %799 = vmatprep.subr.bf16.mxu0 0
          %800 = vmatpush2.bf16.msra.mxu0 0
          %801 = vmatprep.subr.bf16.mxu0 0
          %802 = vmatpush2.bf16.msra.mxu0 0
          %803 = vmatprep.subr.bf16.mxu0 0
          %804 = vmatpush2.bf16.msra.mxu0 0
          %805 = vmatprep.subr.bf16.mxu0 0
          %806 = vmatpush2.bf16.msra.mxu0 0
          %807 = vmatprep.subr.bf16.mxu0 0
          %808 = vmatpush2.bf16.msra.mxu0 0
          %809 = vmatprep.mubr.bf16.mxu0 0
          %810 = vmatmul.mubr.bf16.gmra.mxu0 %v577
          %v811 = vpop.f32.mrf.mxu0
          %v812 = vadd.f32 %v763, %v811
          %v813 = vpop.f32.mrf.mxu0
          %v814 = vpop.f32.mrf.mxu0
          %v815 = vpop.f32.mrf.mxu0
          %816 = vdwg.mxu0
          %v817 = vpack.c.bf16 %v747, %v747
          %s818 = scalar_lea.vmem [#allocation2], 4
          %819 = vst.msk [vmem:[%s818] sm:$0xf] %vm683, %v817
          %v820 = vpack.c.bf16 %v812, %v812
          %s821 = scalar_lea.vmem [#allocation3], 4
          %822 = vst.msk [vmem:[%s821] sm:$0xf] %vm683, %v820
          %s823 = scalar_lea.vmem %s4, 32
          %v824 = vld [vmem:[%s823] sm:$0xf]
          %v825 = vld [vmem:[%s823 + $0x4] sm:$0xf]
          %v826 = vld [vmem:[%s823 + $0x8] sm:$0xf]
          %v827 = vld [vmem:[%s823 + $0xc] sm:$0xf]
          %s828 = scalar_lea.vmem %s5, 2
          %v829 = vld [vmem:[%s828] sm:$0x1]
          %v831 = vlaneseq
          %v832 = vshrl.u32 %v831, 7
          %v833 = vsub.s32 0, %v832
          %v834 = vrot.slane %v829, %v833
          %v840 = vunpack.c.l.b16 %v824
          %v841 = vunpack.c.l.b16 %v825
          %v842 = vunpack.c.l.b16 %v826
          %v843 = vunpack.c.l.b16 %v827
          %v844 = vpack.c.b16 %v841, %v840
          %v845 = vpack.c.b16 %v843, %v842
          %848 = vmatprep.subr.bf16.mxu0 0
          %849 = vmatpush1.bf16.msra.mxu0 0
          %850 = vmatprep.subr.bf16.mxu0 0
          %851 = vmatpush1.bf16.msra.mxu0 0
          %852 = vmatprep.subr.bf16.mxu0 0
          %853 = vmatpush1.bf16.msra.mxu0 0
          %854 = vmatprep.subr.bf16.mxu0 0
          %855 = vmatpush1.bf16.msra.mxu0 0
          %856 = vmatprep.subr.bf16.mxu0 0
          %857 = vmatpush1.bf16.msra.mxu0 0
          %858 = vmatprep.subr.bf16.mxu0 0
          %859 = vmatpush1.bf16.msra.mxu0 0
          %860 = vmatprep.subr.bf16.mxu0 0
          %861 = vmatpush1.bf16.msra.mxu0 %v845
          %862 = vmatprep.subr.bf16.mxu0 0
          %863 = vmatpush1.bf16.msra.mxu0 %v844
          %864 = vmatprep.subr.bf16.mxu0 0
          %865 = vmatpush2.bf16.msra.mxu0 0
          %866 = vmatprep.subr.bf16.mxu0 0
          %867 = vmatpush2.bf16.msra.mxu0 0
          %868 = vmatprep.subr.bf16.mxu0 0
          %869 = vmatpush2.bf16.msra.mxu0 0
          %870 = vmatprep.subr.bf16.mxu0 0
          %871 = vmatpush2.bf16.msra.mxu0 0
          %872 = vmatprep.subr.bf16.mxu0 0
          %873 = vmatpush2.bf16.msra.mxu0 0
          %874 = vmatprep.subr.bf16.mxu0 0
          %875 = vmatpush2.bf16.msra.mxu0 0
          %876 = vmatprep.subr.bf16.mxu0 0
          %877 = vmatpush2.bf16.msra.mxu0 0
          %878 = vmatprep.subr.bf16.mxu0 0
          %879 = vmatpush2.bf16.msra.mxu0 0
          %880 = vmatprep.mubr.bf16.mxu0 0
          %881 = vmatmul.mubr.bf16.gmra.mxu0 %v577
          %v882 = vpop.f32.mrf.mxu0
          %v883 = vadd.f32 %v834, %v882
          %v884 = vpop.f32.mrf.mxu0
          %v885 = vpop.f32.mrf.mxu0
          %v886 = vpop.f32.mrf.mxu0
          %887 = vdwg.mxu0
          %s888 = scalar_lea.vmem %s6, 32
          %v889 = vld [vmem:[%s888] sm:$0xf]
          %v890 = vld [vmem:[%s888 + $0x4] sm:$0xf]
          %v891 = vld [vmem:[%s888 + $0x8] sm:$0xf]
          %v892 = vld [vmem:[%s888 + $0xc] sm:$0xf]
          %s893 = scalar_lea.vmem %s7, 2
          %v894 = vld [vmem:[%s893] sm:$0x1]
          %v896 = vlaneseq
          %v897 = vshrl.u32 %v896, 7
          %v898 = vsub.s32 0, %v897
          %v899 = vrot.slane %v894, %v898
          %v905 = vunpack.c.l.b16 %v889
          %v906 = vunpack.c.l.b16 %v890
          %v907 = vunpack.c.l.b16 %v891
          %v908 = vunpack.c.l.b16 %v892
          %v909 = vpack.c.b16 %v906, %v905
          %v910 = vpack.c.b16 %v908, %v907
          %913 = vmatprep.subr.bf16.mxu0 0
          %914 = vmatpush1.bf16.msra.mxu0 0
          %915 = vmatprep.subr.bf16.mxu0 0
          %916 = vmatpush1.bf16.msra.mxu0 0
          %917 = vmatprep.subr.bf16.mxu0 0
          %918 = vmatpush1.bf16.msra.mxu0 0
          %919 = vmatprep.subr.bf16.mxu0 0
          %920 = vmatpush1.bf16.msra.mxu0 0
          %921 = vmatprep.subr.bf16.mxu0 0
          %922 = vmatpush1.bf16.msra.mxu0 0
          %923 = vmatprep.subr.bf16.mxu0 0
          %924 = vmatpush1.bf16.msra.mxu0 0
          %925 = vmatprep.subr.bf16.mxu0 0
          %926 = vmatpush1.bf16.msra.mxu0 %v910
          %927 = vmatprep.subr.bf16.mxu0 0
          %928 = vmatpush1.bf16.msra.mxu0 %v909
          %929 = vmatprep.subr.bf16.mxu0 0
          %930 = vmatpush2.bf16.msra.mxu0 0
          %931 = vmatprep.subr.bf16.mxu0 0
          %932 = vmatpush2.bf16.msra.mxu0 0
          %933 = vmatprep.subr.bf16.mxu0 0
          %934 = vmatpush2.bf16.msra.mxu0 0
          %935 = vmatprep.subr.bf16.mxu0 0
          %936 = vmatpush2.bf16.msra.mxu0 0
          %937 = vmatprep.subr.bf16.mxu0 0
          %938 = vmatpush2.bf16.msra.mxu0 0
          %939 = vmatprep.subr.bf16.mxu0 0
          %940 = vmatpush2.bf16.msra.mxu0 0
          %941 = vmatprep.subr.bf16.mxu0 0
          %942 = vmatpush2.bf16.msra.mxu0 0
          %943 = vmatprep.subr.bf16.mxu0 0
          %944 = vmatpush2.bf16.msra.mxu0 0
          %945 = vmatprep.mubr.bf16.mxu0 0
          %946 = vmatmul.mubr.bf16.gmra.mxu0 %v577
          %v947 = vpop.f32.mrf.mxu0
          %v948 = vadd.f32 %v899, %v947
          %v949 = vpop.f32.mrf.mxu0
          %v950 = vpop.f32.mrf.mxu0
          %v951 = vpop.f32.mrf.mxu0
          %952 = vdwg.mxu0
          %v953 = vpack.c.bf16 %v883, %v883
          %s954 = scalar_lea.vmem [#allocation2], 8
          %955 = vst.msk [vmem:[%s954] sm:$0xf] %vm683, %v953
          %v956 = vpack.c.bf16 %v948, %v948
          %s957 = scalar_lea.vmem [#allocation3], 8
          %958 = vst.msk [vmem:[%s957] sm:$0xf] %vm683, %v956
          %s959 = scalar_lea.vmem %s4, 48
          %v960 = vld [vmem:[%s959] sm:$0xf]
          %v961 = vld [vmem:[%s959 + $0x4] sm:$0xf]
          %v962 = vld [vmem:[%s959 + $0x8] sm:$0xf]
          %v963 = vld [vmem:[%s959 + $0xc] sm:$0xf]
          %s964 = scalar_lea.vmem %s5, 3
          %v965 = vld [vmem:[%s964] sm:$0x1]
          %v967 = vlaneseq
          %v968 = vshrl.u32 %v967, 7
          %v969 = vsub.s32 0, %v968
          %v970 = vrot.slane %v965, %v969
          %v976 = vunpack.c.l.b16 %v960
          %v977 = vunpack.c.l.b16 %v961
          %v978 = vunpack.c.l.b16 %v962
          %v979 = vunpack.c.l.b16 %v963
          %v980 = vpack.c.b16 %v977, %v976
          %v981 = vpack.c.b16 %v979, %v978
          %984 = vmatprep.subr.bf16.mxu0 0
          %985 = vmatpush1.bf16.msra.mxu0 0
          %986 = vmatprep.subr.bf16.mxu0 0
          %987 = vmatpush1.bf16.msra.mxu0 0
          %988 = vmatprep.subr.bf16.mxu0 0
          %989 = vmatpush1.bf16.msra.mxu0 0
          %990 = vmatprep.subr.bf16.mxu0 0
          %991 = vmatpush1.bf16.msra.mxu0 0
          %992 = vmatprep.subr.bf16.mxu0 0
          %993 = vmatpush1.bf16.msra.mxu0 0
          %994 = vmatprep.subr.bf16.mxu0 0
          %995 = vmatpush1.bf16.msra.mxu0 0
          %996 = vmatprep.subr.bf16.mxu0 0
          %997 = vmatpush1.bf16.msra.mxu0 %v981
          %998 = vmatprep.subr.bf16.mxu0 0
          %999 = vmatpush1.bf16.msra.mxu0 %v980
          %1000 = vmatprep.subr.bf16.mxu0 0
          %1001 = vmatpush2.bf16.msra.mxu0 0
          %1002 = vmatprep.subr.bf16.mxu0 0
          %1003 = vmatpush2.bf16.msra.mxu0 0
          %1004 = vmatprep.subr.bf16.mxu0 0
          %1005 = vmatpush2.bf16.msra.mxu0 0
          %1006 = vmatprep.subr.bf16.mxu0 0
          %1007 = vmatpush2.bf16.msra.mxu0 0
          %1008 = vmatprep.subr.bf16.mxu0 0
          %1009 = vmatpush2.bf16.msra.mxu0 0
          %1010 = vmatprep.subr.bf16.mxu0 0
          %1011 = vmatpush2.bf16.msra.mxu0 0
          %1012 = vmatprep.subr.bf16.mxu0 0
          %1013 = vmatpush2.bf16.msra.mxu0 0
          %1014 = vmatprep.subr.bf16.mxu0 0
          %1015 = vmatpush2.bf16.msra.mxu0 0
          %1016 = vmatprep.mubr.bf16.mxu0 0
          %1017 = vmatmul.mubr.bf16.gmra.mxu0 %v577
          %v1018 = vpop.f32.mrf.mxu0
          %v1019 = vadd.f32 %v970, %v1018
          %v1020 = vpop.f32.mrf.mxu0
          %v1021 = vpop.f32.mrf.mxu0
          %v1022 = vpop.f32.mrf.mxu0
          %1023 = vdwg.mxu0
          %s1024 = scalar_lea.vmem %s6, 48
          %v1025 = vld [vmem:[%s1024] sm:$0xf]
          %v1026 = vld [vmem:[%s1024 + $0x4] sm:$0xf]
          %v1027 = vld [vmem:[%s1024 + $0x8] sm:$0xf]
          %v1028 = vld [vmem:[%s1024 + $0xc] sm:$0xf]
          %s1029 = scalar_lea.vmem %s7, 3
          %v1030 = vld [vmem:[%s1029] sm:$0x1]
          %v1032 = vlaneseq
          %v1033 = vshrl.u32 %v1032, 7
          %v1034 = vsub.s32 0, %v1033
          %v1035 = vrot.slane %v1030, %v1034
          %v1041 = vunpack.c.l.b16 %v1025
          %v1042 = vunpack.c.l.b16 %v1026
          %v1043 = vunpack.c.l.b16 %v1027
          %v1044 = vunpack.c.l.b16 %v1028
          %v1045 = vpack.c.b16 %v1042, %v1041
          %v1046 = vpack.c.b16 %v1044, %v1043
          %1049 = vmatprep.subr.bf16.mxu0 0
          %1050 = vmatpush1.bf16.msra.mxu0 0
          %1051 = vmatprep.subr.bf16.mxu0 0
          %1052 = vmatpush1.bf16.msra.mxu0 0
          %1053 = vmatprep.subr.bf16.mxu0 0
          %1054 = vmatpush1.bf16.msra.mxu0 0
          %1055 = vmatprep.subr.bf16.mxu0 0
          %1056 = vmatpush1.bf16.msra.mxu0 0
          %1057 = vmatprep.subr.bf16.mxu0 0
          %1058 = vmatpush1.bf16.msra.mxu0 0
          %1059 = vmatprep.subr.bf16.mxu0 0
          %1060 = vmatpush1.bf16.msra.mxu0 0
          %1061 = vmatprep.subr.bf16.mxu0 0
          %1062 = vmatpush1.bf16.msra.mxu0 %v1046
          %1063 = vmatprep.subr.bf16.mxu0 0
          %1064 = vmatpush1.bf16.msra.mxu0 %v1045
          %1065 = vmatprep.subr.bf16.mxu0 0
          %1066 = vmatpush2.bf16.msra.mxu0 0
          %1067 = vmatprep.subr.bf16.mxu0 0
          %1068 = vmatpush2.bf16.msra.mxu0 0
          %1069 = vmatprep.subr.bf16.mxu0 0
          %1070 = vmatpush2.bf16.msra.mxu0 0
          %1071 = vmatprep.subr.bf16.mxu0 0
          %1072 = vmatpush2.bf16.msra.mxu0 0
          %1073 = vmatprep.subr.bf16.mxu0 0
          %1074 = vmatpush2.bf16.msra.mxu0 0
          %1075 = vmatprep.subr.bf16.mxu0 0
          %1076 = vmatpush2.bf16.msra.mxu0 0
          %1077 = vmatprep.subr.bf16.mxu0 0
          %1078 = vmatpush2.bf16.msra.mxu0 0
          %1079 = vmatprep.subr.bf16.mxu0 0
          %1080 = vmatpush2.bf16.msra.mxu0 0
          %1081 = vmatprep.mubr.bf16.mxu0 0
          %1082 = vmatmul.mubr.bf16.gmra.mxu0 %v577
          %v1083 = vpop.f32.mrf.mxu0
          %v1084 = vadd.f32 %v1035, %v1083
          %v1085 = vpop.f32.mrf.mxu0
          %v1086 = vpop.f32.mrf.mxu0
          %v1087 = vpop.f32.mrf.mxu0
          %1088 = vdwg.mxu0
          %v1089 = vpack.c.bf16 %v1019, %v1019
          %s1090 = scalar_lea.vmem [#allocation2], 12
          %1091 = vst.msk [vmem:[%s1090] sm:$0xf] %vm683, %v1089
          %v1092 = vpack.c.bf16 %v1084, %v1084
          %s1093 = scalar_lea.vmem [#allocation3], 12
          %1094 = vst.msk [vmem:[%s1093] sm:$0xf] %vm683, %v1092
        $region88: #{tpu_custom_call.1} parent=83 // pred_fallthru
          _
        %s1095 = smul.u32 %s35, 8
        %s1096 = scalar_lea.vmem %s541, %s1095
        %v1097 = vld [vmem:[%s1096] sm:$0xff]
        %v1098 = vpack.c.bf16 %v1097, %v1097
        %v1099 = vld [vmem:[%s544] sm:$0x1]
        %v1100 = vsub.f32 1.0, %v1099
        %v1101 = vmul.f32 %v1100, -1e+09
        %v1102 = vld [vmem:[%s2] sm:$0xf]
        %v1103 = vld [vmem:[%s2 + $0x4] sm:$0xf]
        %v1104 = vld [vmem:[%s2 + $0x8] sm:$0xf]
        %v1105 = vld [vmem:[%s2 + $0xc] sm:$0xf]
        %v1106 = vld [vmem:[%s3] sm:$0x1]
        %v1108 = vlaneseq
        %v1109 = vshrl.u32 %v1108, 7
        %v1110 = vsub.s32 0, %v1109
        %v1111 = vrot.slane %v1106, %v1110
        %v1117 = vunpack.c.l.b16 %v1102
        %v1118 = vunpack.c.l.b16 %v1103
        %v1119 = vunpack.c.l.b16 %v1104
        %v1120 = vunpack.c.l.b16 %v1105
        %v1121 = vpack.c.b16 %v1118, %v1117
        %v1122 = vpack.c.b16 %v1120, %v1119
        %vm1125 = vcmask 261120
        %v1127 = vsel %vm1125, %v1098, 0
        %1129 = vmatprep.subr.bf16.mxu0 0
        %1130 = vmatpush1.bf16.msra.mxu0 0
        %1131 = vmatprep.subr.bf16.mxu0 0
        %1132 = vmatpush1.bf16.msra.mxu0 0
        %1133 = vmatprep.subr.bf16.mxu0 0
        %1134 = vmatpush1.bf16.msra.mxu0 0
        %1135 = vmatprep.subr.bf16.mxu0 0
        %1136 = vmatpush1.bf16.msra.mxu0 0
        %1137 = vmatprep.subr.bf16.mxu0 0
        %1138 = vmatpush1.bf16.msra.mxu0 0
        %1139 = vmatprep.subr.bf16.mxu0 0
        %1140 = vmatpush1.bf16.msra.mxu0 0
        %1141 = vmatprep.subr.bf16.mxu0 0
        %1142 = vmatpush1.bf16.msra.mxu0 %v1122
        %1143 = vmatprep.subr.bf16.mxu0 0
        %1144 = vmatpush1.bf16.msra.mxu0 %v1121
        %1145 = vmatprep.subr.bf16.mxu0 0
        %1146 = vmatpush2.bf16.msra.mxu0 0
        %1147 = vmatprep.subr.bf16.mxu0 0
        %1148 = vmatpush2.bf16.msra.mxu0 0
        %1149 = vmatprep.subr.bf16.mxu0 0
        %1150 = vmatpush2.bf16.msra.mxu0 0
        %1151 = vmatprep.subr.bf16.mxu0 0
        %1152 = vmatpush2.bf16.msra.mxu0 0
        %1153 = vmatprep.subr.bf16.mxu0 0
        %1154 = vmatpush2.bf16.msra.mxu0 0
        %1155 = vmatprep.subr.bf16.mxu0 0
        %1156 = vmatpush2.bf16.msra.mxu0 0
        %1157 = vmatprep.subr.bf16.mxu0 0
        %1158 = vmatpush2.bf16.msra.mxu0 0
        %1159 = vmatprep.subr.bf16.mxu0 0
        %1160 = vmatpush2.bf16.msra.mxu0 0
        %1161 = vmatprep.mubr.bf16.mxu0 0
        %1162 = vmatmul.mubr.bf16.gmra.mxu0 %v1127
        %v1163 = vpop.f32.mrf.mxu0
        %v1164 = vadd.f32 %v1111, %v1163
        %v1165 = vpop.f32.mrf.mxu0
        %v1166 = vpop.f32.mrf.mxu0
        %v1167 = vpop.f32.mrf.mxu0
        %1168 = vdwg.mxu0
        %v1169 = vpack.c.bf16 %v1164, %v1164
        %v1170 = vld [vmem:[#allocation2] sm:$0xf]
        %v1172 = vlaneseq
        %v1173 = vshrl.u32 %v1172, 7
        %v1174 = vsub.s32 0, %v1173
        %v1175 = vrot.slane %v1101, %v1174
        %vm1177 = vcmask 64512
        %v1179 = vsel %vm1177, %v1169, 0
        %v1182 = vsel %vm1177, %v1170, 0
        %1184 = vmatprep.subr.bf16.mxu0 0
        %1185 = vmatpush1.bf16.xpose.msra.mxu0 0
        %1186 = vmatprep.subr.bf16.mxu0 0
        %1187 = vmatpush1.bf16.xpose.msra.mxu0 0
        %1188 = vmatprep.subr.bf16.mxu0 0
        %1189 = vmatpush1.bf16.xpose.msra.mxu0 0
        %1190 = vmatprep.subr.bf16.mxu0 0
        %1191 = vmatpush1.bf16.xpose.msra.mxu0 0
        %1192 = vmatprep.subr.bf16.mxu0 0
        %1193 = vmatpush1.bf16.xpose.msra.mxu0 0
        %1194 = vmatprep.subr.bf16.mxu0 0
        %1195 = vmatpush1.bf16.xpose.msra.mxu0 0
        %1196 = vmatprep.subr.bf16.mxu0 0
        %1197 = vmatpush1.bf16.xpose.msra.mxu0 0
        %1198 = vmatprep.subr.bf16.mxu0 0
        %1199 = vmatpush1.bf16.xpose.msra.mxu0 %v1182
        %1200 = vmatprep.subr.bf16.mxu0 0
        %1201 = vmatpush2.bf16.xpose.msra.mxu0 0
        %1202 = vmatprep.subr.bf16.mxu0 0
        %1203 = vmatpush2.bf16.xpose.msra.mxu0 0
        %1204 = vmatprep.subr.bf16.mxu0 0
        %1205 = vmatpush2.bf16.xpose.msra.mxu0 0
        %1206 = vmatprep.subr.bf16.mxu0 0
        %1207 = vmatpush2.bf16.xpose.msra.mxu0 0
        %1208 = vmatprep.subr.bf16.mxu0 0
        %1209 = vmatpush2.bf16.xpose.msra.mxu0 0
        %1210 = vmatprep.subr.bf16.mxu0 0
        %1211 = vmatpush2.bf16.xpose.msra.mxu0 0
        %1212 = vmatprep.subr.bf16.mxu0 0
        %1213 = vmatpush2.bf16.xpose.msra.mxu0 0
        %1214 = vmatprep.subr.bf16.mxu0 0
        %1215 = vmatpush2.bf16.xpose.msra.mxu0 0
        %1216 = vmatprep.mubr.bf16.mxu0 0
        %1217 = vmatmul.mubr.bf16.gmra.mxu0 %v1179
        %v1218 = vpop.f32.mrf.mxu0
        %v1219 = vadd.f32 %v1175, %v1218
        %v1220 = vpop.f32.mrf.mxu0
        %v1221 = vpop.f32.mrf.mxu0
        %v1222 = vpop.f32.mrf.mxu0
        %1223 = vdwg.mxu0
        %v1224 = vsel %vm1177, %v1219, -inf
        %1225 = vmax.xlane.f32.xlu0 %v1224
        %v1226 = vpop.xlane.xlu0 %1225
        %v1227 = vsub.f32 %v1219, %v1226
        %v1228 = vmul.f32 %v1227, 1.442695
        %v1229 = vpow.pop %v1228
        %v1230 = vsel %vm1177, %v1229, 0.0
        %1231 = vadd.xlane.f32.xlu0 %v1230
        %v1232 = vpop.xlane.xlu0 %1231
        %v1233 = vrcp.pop %v1232
        %v1234 = vmul.f32 %v1229, %v1233
        %v1235 = vpack.c.bf16 %v1234, %v1234
        %v1236 = vld [vmem:[#allocation3] sm:$0xf]
        %v1238 = vsel %vm1177, %v1235, 0
        %vm1240 = vcmask 1043456
        %v1242 = vsel %vm1240, %v1236, 0
        %1244 = vmatprep.subr.bf16.mxu0 0
        %1245 = vmatpush1.bf16.msra.mxu0 0
        %1246 = vmatprep.subr.bf16.mxu0 0
        %1247 = vmatpush1.bf16.msra.mxu0 0
        %1248 = vmatprep.subr.bf16.mxu0 0
        %1249 = vmatpush1.bf16.msra.mxu0 0
        %1250 = vmatprep.subr.bf16.mxu0 0
        %1251 = vmatpush1.bf16.msra.mxu0 0
        %1252 = vmatprep.subr.bf16.mxu0 0
        %1253 = vmatpush1.bf16.msra.mxu0 0
        %1254 = vmatprep.subr.bf16.mxu0 0
        %1255 = vmatpush1.bf16.msra.mxu0 0
        %1256 = vmatprep.subr.bf16.mxu0 0
        %1257 = vmatpush1.bf16.msra.mxu0 0
        %1258 = vmatprep.subr.bf16.mxu0 0
        %1259 = vmatpush1.bf16.msra.mxu0 %v1242
        %1260 = vmatprep.subr.bf16.mxu0 0
        %1261 = vmatpush2.bf16.msra.mxu0 0
        %1262 = vmatprep.subr.bf16.mxu0 0
        %1263 = vmatpush2.bf16.msra.mxu0 0
        %1264 = vmatprep.subr.bf16.mxu0 0
        %1265 = vmatpush2.bf16.msra.mxu0 0
        %1266 = vmatprep.subr.bf16.mxu0 0
        %1267 = vmatpush2.bf16.msra.mxu0 0
        %1268 = vmatprep.subr.bf16.mxu0 0
        %1269 = vmatpush2.bf16.msra.mxu0 0
        %1270 = vmatprep.subr.bf16.mxu0 0
        %1271 = vmatpush2.bf16.msra.mxu0 0
        %1272 = vmatprep.subr.bf16.mxu0 0
        %1273 = vmatpush2.bf16.msra.mxu0 0
        %1274 = vmatprep.subr.bf16.mxu0 0
        %1275 = vmatpush2.bf16.msra.mxu0 0
        %1276 = vmatprep.mubr.bf16.mxu0 0
        %1277 = vmatmul.mubr.bf16.gmra.mxu0 %v1238
        %v1278 = vpop.f32.mrf.mxu0
        %v1279 = vadd.f32 0.0, %v1278
        %v1280 = vpop.f32.mrf.mxu0
        %v1281 = vpop.f32.mrf.mxu0
        %v1282 = vpop.f32.mrf.mxu0
        %1283 = vdwg.mxu0
        %v1284 = vpack.c.bf16 %v1279, %v1279
        %vm1285 = vcmask 60416
        %1286 = vst.msk [vmem:[#allocation4] sm:$0xf] %vm1285, %v1284
        %s1287 = scalar_lea.vmem %s2, 16
        %v1288 = vld [vmem:[%s1287] sm:$0xf]
        %v1289 = vld [vmem:[%s1287 + $0x4] sm:$0xf]
        %v1290 = vld [vmem:[%s1287 + $0x8] sm:$0xf]
        %v1291 = vld [vmem:[%s1287 + $0xc] sm:$0xf]
        %s1292 = scalar_lea.vmem %s3, 1
        %v1293 = vld [vmem:[%s1292] sm:$0x1]
        %v1295 = vlaneseq
        %v1296 = vshrl.u32 %v1295, 7
        %v1297 = vsub.s32 0, %v1296
        %v1298 = vrot.slane %v1293, %v1297
        %v1304 = vunpack.c.l.b16 %v1288
        %v1305 = vunpack.c.l.b16 %v1289
        %v1306 = vunpack.c.l.b16 %v1290
        %v1307 = vunpack.c.l.b16 %v1291
        %v1308 = vpack.c.b16 %v1305, %v1304
        %v1309 = vpack.c.b16 %v1307, %v1306
        %1312 = vmatprep.subr.bf16.mxu0 0
        %1313 = vmatpush1.bf16.msra.mxu0 0
        %1314 = vmatprep.subr.bf16.mxu0 0
        %1315 = vmatpush1.bf16.msra.mxu0 0
        %1316 = vmatprep.subr.bf16.mxu0 0
        %1317 = vmatpush1.bf16.msra.mxu0 0
        %1318 = vmatprep.subr.bf16.mxu0 0
        %1319 = vmatpush1.bf16.msra.mxu0 0
        %1320 = vmatprep.subr.bf16.mxu0 0
        %1321 = vmatpush1.bf16.msra.mxu0 0
        %1322 = vmatprep.subr.bf16.mxu0 0
        %1323 = vmatpush1.bf16.msra.mxu0 0
        %1324 = vmatprep.subr.bf16.mxu0 0
        %1325 = vmatpush1.bf16.msra.mxu0 %v1309
        %1326 = vmatprep.subr.bf16.mxu0 0
        %1327 = vmatpush1.bf16.msra.mxu0 %v1308
        %1328 = vmatprep.subr.bf16.mxu0 0
        %1329 = vmatpush2.bf16.msra.mxu0 0
        %1330 = vmatprep.subr.bf16.mxu0 0
        %1331 = vmatpush2.bf16.msra.mxu0 0
        %1332 = vmatprep.subr.bf16.mxu0 0
        %1333 = vmatpush2.bf16.msra.mxu0 0
        %1334 = vmatprep.subr.bf16.mxu0 0
        %1335 = vmatpush2.bf16.msra.mxu0 0
        %1336 = vmatprep.subr.bf16.mxu0 0
        %1337 = vmatpush2.bf16.msra.mxu0 0
        %1338 = vmatprep.subr.bf16.mxu0 0
        %1339 = vmatpush2.bf16.msra.mxu0 0
        %1340 = vmatprep.subr.bf16.mxu0 0
        %1341 = vmatpush2.bf16.msra.mxu0 0
        %1342 = vmatprep.subr.bf16.mxu0 0
        %1343 = vmatpush2.bf16.msra.mxu0 0
        %1344 = vmatprep.mubr.bf16.mxu0 0
        %1345 = vmatmul.mubr.bf16.gmra.mxu0 %v1127
        %v1346 = vpop.f32.mrf.mxu0
        %v1347 = vadd.f32 %v1298, %v1346
        %v1348 = vpop.f32.mrf.mxu0
        %v1349 = vpop.f32.mrf.mxu0
        %v1350 = vpop.f32.mrf.mxu0
        %1351 = vdwg.mxu0
        %v1352 = vpack.c.bf16 %v1347, %v1347
        %s1353 = scalar_lea.vmem [#allocation2], 4
        %v1354 = vld [vmem:[%s1353] sm:$0xf]
        %v1356 = vsel %vm1177, %v1352, 0
        %v1359 = vsel %vm1177, %v1354, 0
        %1361 = vmatprep.subr.bf16.mxu0 0
        %1362 = vmatpush1.bf16.xpose.msra.mxu0 0
        %1363 = vmatprep.subr.bf16.mxu0 0
        %1364 = vmatpush1.bf16.xpose.msra.mxu0 0
        %1365 = vmatprep.subr.bf16.mxu0 0
        %1366 = vmatpush1.bf16.xpose.msra.mxu0 0
        %1367 = vmatprep.subr.bf16.mxu0 0
        %1368 = vmatpush1.bf16.xpose.msra.mxu0 0
        %1369 = vmatprep.subr.bf16.mxu0 0
        %1370 = vmatpush1.bf16.xpose.msra.mxu0 0
        %1371 = vmatprep.subr.bf16.mxu0 0
        %1372 = vmatpush1.bf16.xpose.msra.mxu0 0
        %1373 = vmatprep.subr.bf16.mxu0 0
        %1374 = vmatpush1.bf16.xpose.msra.mxu0 0
        %1375 = vmatprep.subr.bf16.mxu0 0
        %1376 = vmatpush1.bf16.xpose.msra.mxu0 %v1359
        %1377 = vmatprep.subr.bf16.mxu0 0
        %1378 = vmatpush2.bf16.xpose.msra.mxu0 0
        %1379 = vmatprep.subr.bf16.mxu0 0
        %1380 = vmatpush2.bf16.xpose.msra.mxu0 0
        %1381 = vmatprep.subr.bf16.mxu0 0
        %1382 = vmatpush2.bf16.xpose.msra.mxu0 0
        %1383 = vmatprep.subr.bf16.mxu0 0
        %1384 = vmatpush2.bf16.xpose.msra.mxu0 0
        %1385 = vmatprep.subr.bf16.mxu0 0
        %1386 = vmatpush2.bf16.xpose.msra.mxu0 0
        %1387 = vmatprep.subr.bf16.mxu0 0
        %1388 = vmatpush2.bf16.xpose.msra.mxu0 0
        %1389 = vmatprep.subr.bf16.mxu0 0
        %1390 = vmatpush2.bf16.xpose.msra.mxu0 0
        %1391 = vmatprep.subr.bf16.mxu0 0
        %1392 = vmatpush2.bf16.xpose.msra.mxu0 0
        %1393 = vmatprep.mubr.bf16.mxu0 0
        %1394 = vmatmul.mubr.bf16.gmra.mxu0 %v1356
        %v1395 = vpop.f32.mrf.mxu0
        %v1396 = vadd.f32 %v1175, %v1395
        %v1397 = vpop.f32.mrf.mxu0
        %v1398 = vpop.f32.mrf.mxu0
        %v1399 = vpop.f32.mrf.mxu0
        %1400 = vdwg.mxu0
        %v1401 = vsel %vm1177, %v1396, -inf
        %1402 = vmax.xlane.f32.xlu0 %v1401
        %v1403 = vpop.xlane.xlu0 %1402
        %v1404 = vsub.f32 %v1396, %v1403
        %v1405 = vmul.f32 %v1404, 1.442695
        %v1406 = vpow.pop %v1405
        %v1407 = vsel %vm1177, %v1406, 0.0
        %1408 = vadd.xlane.f32.xlu0 %v1407
        %v1409 = vpop.xlane.xlu0 %1408
        %v1410 = vrcp.pop %v1409
        %v1411 = vmul.f32 %v1406, %v1410
        %v1412 = vpack.c.bf16 %v1411, %v1411
        %s1413 = scalar_lea.vmem [#allocation3], 4
        %v1414 = vld [vmem:[%s1413] sm:$0xf]
        %v1416 = vsel %vm1177, %v1412, 0
        %v1419 = vsel %vm1240, %v1414, 0
        %1421 = vmatprep.subr.bf16.mxu0 0
        %1422 = vmatpush1.bf16.msra.mxu0 0
        %1423 = vmatprep.subr.bf16.mxu0 0
        %1424 = vmatpush1.bf16.msra.mxu0 0
        %1425 = vmatprep.subr.bf16.mxu0 0
        %1426 = vmatpush1.bf16.msra.mxu0 0
        %1427 = vmatprep.subr.bf16.mxu0 0
        %1428 = vmatpush1.bf16.msra.mxu0 0
        %1429 = vmatprep.subr.bf16.mxu0 0
        %1430 = vmatpush1.bf16.msra.mxu0 0
        %1431 = vmatprep.subr.bf16.mxu0 0
        %1432 = vmatpush1.bf16.msra.mxu0 0
        %1433 = vmatprep.subr.bf16.mxu0 0
        %1434 = vmatpush1.bf16.msra.mxu0 0
        %1435 = vmatprep.subr.bf16.mxu0 0
        %1436 = vmatpush1.bf16.msra.mxu0 %v1419
        %1437 = vmatprep.subr.bf16.mxu0 0
        %1438 = vmatpush2.bf16.msra.mxu0 0
        %1439 = vmatprep.subr.bf16.mxu0 0
        %1440 = vmatpush2.bf16.msra.mxu0 0
        %1441 = vmatprep.subr.bf16.mxu0 0
        %1442 = vmatpush2.bf16.msra.mxu0 0
        %1443 = vmatprep.subr.bf16.mxu0 0
        %1444 = vmatpush2.bf16.msra.mxu0 0
        %1445 = vmatprep.subr.bf16.mxu0 0
        %1446 = vmatpush2.bf16.msra.mxu0 0
        %1447 = vmatprep.subr.bf16.mxu0 0
        %1448 = vmatpush2.bf16.msra.mxu0 0
        %1449 = vmatprep.subr.bf16.mxu0 0
        %1450 = vmatpush2.bf16.msra.mxu0 0
        %1451 = vmatprep.subr.bf16.mxu0 0
        %1452 = vmatpush2.bf16.msra.mxu0 0
        %1453 = vmatprep.mubr.bf16.mxu0 0
        %1454 = vmatmul.mubr.bf16.gmra.mxu0 %v1416
        %v1455 = vpop.f32.mrf.mxu0
        %v1456 = vadd.f32 0.0, %v1455
        %v1457 = vpop.f32.mrf.mxu0
        %v1458 = vpop.f32.mrf.mxu0
        %v1459 = vpop.f32.mrf.mxu0
        %1460 = vdwg.mxu0
        %v1461 = vpack.c.bf16 %v1456, %v1456
        %v1463 = vunpack.c.l.b16 %v1461
        %v1464 = vpack.c.b16 %v1463, %v1463
        %1465 = vrot.lane.b32.xlu0 %v1464, 8
        %v1466 = vpop.permute.xlu0 %1465
        %vm1468 = vcmask 126016
        %1469 = vst.msk [vmem:[#allocation4] sm:$0xf] %vm1468, %v1466
        %s1470 = scalar_lea.vmem %s2, 32
        %v1471 = vld [vmem:[%s1470] sm:$0xf]
        %v1472 = vld [vmem:[%s1470 + $0x4] sm:$0xf]
        %v1473 = vld [vmem:[%s1470 + $0x8] sm:$0xf]
        %v1474 = vld [vmem:[%s1470 + $0xc] sm:$0xf]
        %s1475 = scalar_lea.vmem %s3, 2
        %v1476 = vld [vmem:[%s1475] sm:$0x1]
        %v1478 = vlaneseq
        %v1479 = vshrl.u32 %v1478, 7
        %v1480 = vsub.s32 0, %v1479
        %v1481 = vrot.slane %v1476, %v1480
        %v1487 = vunpack.c.l.b16 %v1471
        %v1488 = vunpack.c.l.b16 %v1472
        %v1489 = vunpack.c.l.b16 %v1473
        %v1490 = vunpack.c.l.b16 %v1474
        %v1491 = vpack.c.b16 %v1488, %v1487
        %v1492 = vpack.c.b16 %v1490, %v1489
        %1495 = vmatprep.subr.bf16.mxu0 0
        %1496 = vmatpush1.bf16.msra.mxu0 0
        %1497 = vmatprep.subr.bf16.mxu0 0
        %1498 = vmatpush1.bf16.msra.mxu0 0
        %1499 = vmatprep.subr.bf16.mxu0 0
        %1500 = vmatpush1.bf16.msra.mxu0 0
        %1501 = vmatprep.subr.bf16.mxu0 0
        %1502 = vmatpush1.bf16.msra.mxu0 0
        %1503 = vmatprep.subr.bf16.mxu0 0
        %1504 = vmatpush1.bf16.msra.mxu0 0
        %1505 = vmatprep.subr.bf16.mxu0 0
        %1506 = vmatpush1.bf16.msra.mxu0 0
        %1507 = vmatprep.subr.bf16.mxu0 0
        %1508 = vmatpush1.bf16.msra.mxu0 %v1492
        %1509 = vmatprep.subr.bf16.mxu0 0
        %1510 = vmatpush1.bf16.msra.mxu0 %v1491
        %1511 = vmatprep.subr.bf16.mxu0 0
        %1512 = vmatpush2.bf16.msra.mxu0 0
        %1513 = vmatprep.subr.bf16.mxu0 0
        %1514 = vmatpush2.bf16.msra.mxu0 0
        %1515 = vmatprep.subr.bf16.mxu0 0
        %1516 = vmatpush2.bf16.msra.mxu0 0
        %1517 = vmatprep.subr.bf16.mxu0 0
        %1518 = vmatpush2.bf16.msra.mxu0 0
        %1519 = vmatprep.subr.bf16.mxu0 0
        %1520 = vmatpush2.bf16.msra.mxu0 0
        %1521 = vmatprep.subr.bf16.mxu0 0
        %1522 = vmatpush2.bf16.msra.mxu0 0
        %1523 = vmatprep.subr.bf16.mxu0 0
        %1524 = vmatpush2.bf16.msra.mxu0 0
        %1525 = vmatprep.subr.bf16.mxu0 0
        %1526 = vmatpush2.bf16.msra.mxu0 0
        %1527 = vmatprep.mubr.bf16.mxu0 0
        %1528 = vmatmul.mubr.bf16.gmra.mxu0 %v1127
        %v1529 = vpop.f32.mrf.mxu0
        %v1530 = vadd.f32 %v1481, %v1529
        %v1531 = vpop.f32.mrf.mxu0
        %v1532 = vpop.f32.mrf.mxu0
        %v1533 = vpop.f32.mrf.mxu0
        %1534 = vdwg.mxu0
        %v1535 = vpack.c.bf16 %v1530, %v1530
        %s1536 = scalar_lea.vmem [#allocation2], 8
        %v1537 = vld [vmem:[%s1536] sm:$0xf]
        %v1539 = vsel %vm1177, %v1535, 0
        %v1542 = vsel %vm1177, %v1537, 0
        %1544 = vmatprep.subr.bf16.mxu0 0
        %1545 = vmatpush1.bf16.xpose.msra.mxu0 0
        %1546 = vmatprep.subr.bf16.mxu0 0
        %1547 = vmatpush1.bf16.xpose.msra.mxu0 0
        %1548 = vmatprep.subr.bf16.mxu0 0
        %1549 = vmatpush1.bf16.xpose.msra.mxu0 0
        %1550 = vmatprep.subr.bf16.mxu0 0
        %1551 = vmatpush1.bf16.xpose.msra.mxu0 0
        %1552 = vmatprep.subr.bf16.mxu0 0
        %1553 = vmatpush1.bf16.xpose.msra.mxu0 0
        %1554 = vmatprep.subr.bf16.mxu0 0
        %1555 = vmatpush1.bf16.xpose.msra.mxu0 0
        %1556 = vmatprep.subr.bf16.mxu0 0
        %1557 = vmatpush1.bf16.xpose.msra.mxu0 0
        %1558 = vmatprep.subr.bf16.mxu0 0
        %1559 = vmatpush1.bf16.xpose.msra.mxu0 %v1542
        %1560 = vmatprep.subr.bf16.mxu0 0
        %1561 = vmatpush2.bf16.xpose.msra.mxu0 0
        %1562 = vmatprep.subr.bf16.mxu0 0
        %1563 = vmatpush2.bf16.xpose.msra.mxu0 0
        %1564 = vmatprep.subr.bf16.mxu0 0
        %1565 = vmatpush2.bf16.xpose.msra.mxu0 0
        %1566 = vmatprep.subr.bf16.mxu0 0
        %1567 = vmatpush2.bf16.xpose.msra.mxu0 0
        %1568 = vmatprep.subr.bf16.mxu0 0
        %1569 = vmatpush2.bf16.xpose.msra.mxu0 0
        %1570 = vmatprep.subr.bf16.mxu0 0
        %1571 = vmatpush2.bf16.xpose.msra.mxu0 0
        %1572 = vmatprep.subr.bf16.mxu0 0
        %1573 = vmatpush2.bf16.xpose.msra.mxu0 0
        %1574 = vmatprep.subr.bf16.mxu0 0
        %1575 = vmatpush2.bf16.xpose.msra.mxu0 0
        %1576 = vmatprep.mubr.bf16.mxu0 0
        %1577 = vmatmul.mubr.bf16.gmra.mxu0 %v1539
        %v1578 = vpop.f32.mrf.mxu0
        %v1579 = vadd.f32 %v1175, %v1578
        %v1580 = vpop.f32.mrf.mxu0
        %v1581 = vpop.f32.mrf.mxu0
        %v1582 = vpop.f32.mrf.mxu0
        %1583 = vdwg.mxu0
        %v1584 = vsel %vm1177, %v1579, -inf
        %1585 = vmax.xlane.f32.xlu0 %v1584
        %v1586 = vpop.xlane.xlu0 %1585
        %v1587 = vsub.f32 %v1579, %v1586
        %v1588 = vmul.f32 %v1587, 1.442695
        %v1589 = vpow.pop %v1588
        %v1590 = vsel %vm1177, %v1589, 0.0
        %1591 = vadd.xlane.f32.xlu0 %v1590
        %v1592 = vpop.xlane.xlu0 %1591
        %v1593 = vrcp.pop %v1592
        %v1594 = vmul.f32 %v1589, %v1593
        %v1595 = vpack.c.bf16 %v1594, %v1594
        %s1596 = scalar_lea.vmem [#allocation3], 8
        %v1597 = vld [vmem:[%s1596] sm:$0xf]
        %v1599 = vsel %vm1177, %v1595, 0
        %v1602 = vsel %vm1240, %v1597, 0
        %1604 = vmatprep.subr.bf16.mxu0 0
        %1605 = vmatpush1.bf16.msra.mxu0 0
        %1606 = vmatprep.subr.bf16.mxu0 0
        %1607 = vmatpush1.bf16.msra.mxu0 0
        %1608 = vmatprep.subr.bf16.mxu0 0
        %1609 = vmatpush1.bf16.msra.mxu0 0
        %1610 = vmatprep.subr.bf16.mxu0 0
        %1611 = vmatpush1.bf16.msra.mxu0 0
        %1612 = vmatprep.subr.bf16.mxu0 0
        %1613 = vmatpush1.bf16.msra.mxu0 0
        %1614 = vmatprep.subr.bf16.mxu0 0
        %1615 = vmatpush1.bf16.msra.mxu0 0
        %1616 = vmatprep.subr.bf16.mxu0 0
        %1617 = vmatpush1.bf16.msra.mxu0 0
        %1618 = vmatprep.subr.bf16.mxu0 0
        %1619 = vmatpush1.bf16.msra.mxu0 %v1602
        %1620 = vmatprep.subr.bf16.mxu0 0
        %1621 = vmatpush2.bf16.msra.mxu0 0
        %1622 = vmatprep.subr.bf16.mxu0 0
        %1623 = vmatpush2.bf16.msra.mxu0 0
        %1624 = vmatprep.subr.bf16.mxu0 0
        %1625 = vmatpush2.bf16.msra.mxu0 0
        %1626 = vmatprep.subr.bf16.mxu0 0
        %1627 = vmatpush2.bf16.msra.mxu0 0
        %1628 = vmatprep.subr.bf16.mxu0 0
        %1629 = vmatpush2.bf16.msra.mxu0 0
        %1630 = vmatprep.subr.bf16.mxu0 0
        %1631 = vmatpush2.bf16.msra.mxu0 0
        %1632 = vmatprep.subr.bf16.mxu0 0
        %1633 = vmatpush2.bf16.msra.mxu0 0
        %1634 = vmatprep.subr.bf16.mxu0 0
        %1635 = vmatpush2.bf16.msra.mxu0 0
        %1636 = vmatprep.mubr.bf16.mxu0 0
        %1637 = vmatmul.mubr.bf16.gmra.mxu0 %v1599
        %v1638 = vpop.f32.mrf.mxu0
        %v1639 = vadd.f32 0.0, %v1638
        %v1640 = vpop.f32.mrf.mxu0
        %v1641 = vpop.f32.mrf.mxu0
        %v1642 = vpop.f32.mrf.mxu0
        %1643 = vdwg.mxu0
        %v1644 = vpack.c.bf16 %v1639, %v1639
        %v1646 = vunpack.c.l.b16 %v1644
        %v1647 = vpack.c.b16 %v1646, %v1646
        %1648 = vrot.lane.b32.xlu0 %v1647, 16
        %v1649 = vpop.permute.xlu0 %1648
        %vm1651 = vcmask 191616
        %1652 = vst.msk [vmem:[#allocation4] sm:$0xf] %vm1651, %v1649
        %s1653 = scalar_lea.vmem %s2, 48
        %v1654 = vld [vmem:[%s1653] sm:$0xf]
        %v1655 = vld [vmem:[%s1653 + $0x4] sm:$0xf]
        %v1656 = vld [vmem:[%s1653 + $0x8] sm:$0xf]
        %v1657 = vld [vmem:[%s1653 + $0xc] sm:$0xf]
        %s1658 = scalar_lea.vmem %s3, 3
        %v1659 = vld [vmem:[%s1658] sm:$0x1]
        %v1661 = vlaneseq
        %v1662 = vshrl.u32 %v1661, 7
        %v1663 = vsub.s32 0, %v1662
        %v1664 = vrot.slane %v1659, %v1663
        %v1670 = vunpack.c.l.b16 %v1654
        %v1671 = vunpack.c.l.b16 %v1655
        %v1672 = vunpack.c.l.b16 %v1656
        %v1673 = vunpack.c.l.b16 %v1657
        %v1674 = vpack.c.b16 %v1671, %v1670
        %v1675 = vpack.c.b16 %v1673, %v1672
        %1678 = vmatprep.subr.bf16.mxu0 0
        %1679 = vmatpush1.bf16.msra.mxu0 0
        %1680 = vmatprep.subr.bf16.mxu0 0
        %1681 = vmatpush1.bf16.msra.mxu0 0
        %1682 = vmatprep.subr.bf16.mxu0 0
        %1683 = vmatpush1.bf16.msra.mxu0 0
        %1684 = vmatprep.subr.bf16.mxu0 0
        %1685 = vmatpush1.bf16.msra.mxu0 0
        %1686 = vmatprep.subr.bf16.mxu0 0
        %1687 = vmatpush1.bf16.msra.mxu0 0
        %1688 = vmatprep.subr.bf16.mxu0 0
        %1689 = vmatpush1.bf16.msra.mxu0 0
        %1690 = vmatprep.subr.bf16.mxu0 0
        %1691 = vmatpush1.bf16.msra.mxu0 %v1675
        %1692 = vmatprep.subr.bf16.mxu0 0
        %1693 = vmatpush1.bf16.msra.mxu0 %v1674
        %1694 = vmatprep.subr.bf16.mxu0 0
        %1695 = vmatpush2.bf16.msra.mxu0 0
        %1696 = vmatprep.subr.bf16.mxu0 0
        %1697 = vmatpush2.bf16.msra.mxu0 0
        %1698 = vmatprep.subr.bf16.mxu0 0
        %1699 = vmatpush2.bf16.msra.mxu0 0
        %1700 = vmatprep.subr.bf16.mxu0 0
        %1701 = vmatpush2.bf16.msra.mxu0 0
        %1702 = vmatprep.subr.bf16.mxu0 0
        %1703 = vmatpush2.bf16.msra.mxu0 0
        %1704 = vmatprep.subr.bf16.mxu0 0
        %1705 = vmatpush2.bf16.msra.mxu0 0
        %1706 = vmatprep.subr.bf16.mxu0 0
        %1707 = vmatpush2.bf16.msra.mxu0 0
        %1708 = vmatprep.subr.bf16.mxu0 0
        %1709 = vmatpush2.bf16.msra.mxu0 0
        %1710 = vmatprep.mubr.bf16.mxu0 0
        %1711 = vmatmul.mubr.bf16.gmra.mxu0 %v1127
        %v1712 = vpop.f32.mrf.mxu0
        %v1713 = vadd.f32 %v1664, %v1712
        %v1714 = vpop.f32.mrf.mxu0
        %v1715 = vpop.f32.mrf.mxu0
        %v1716 = vpop.f32.mrf.mxu0
        %1717 = vdwg.mxu0
        %v1718 = vpack.c.bf16 %v1713, %v1713
        %s1719 = scalar_lea.vmem [#allocation2], 12
        %v1720 = vld [vmem:[%s1719] sm:$0xf]
        %v1722 = vsel %vm1177, %v1718, 0
        %v1725 = vsel %vm1177, %v1720, 0
        %1727 = vmatprep.subr.bf16.mxu0 0
        %1728 = vmatpush1.bf16.xpose.msra.mxu0 0
        %1729 = vmatprep.subr.bf16.mxu0 0
        %1730 = vmatpush1.bf16.xpose.msra.mxu0 0
        %1731 = vmatprep.subr.bf16.mxu0 0
        %1732 = vmatpush1.bf16.xpose.msra.mxu0 0
        %1733 = vmatprep.subr.bf16.mxu0 0
        %1734 = vmatpush1.bf16.xpose.msra.mxu0 0
        %1735 = vmatprep.subr.bf16.mxu0 0
        %1736 = vmatpush1.bf16.xpose.msra.mxu0 0
        %1737 = vmatprep.subr.bf16.mxu0 0
        %1738 = vmatpush1.bf16.xpose.msra.mxu0 0
        %1739 = vmatprep.subr.bf16.mxu0 0
        %1740 = vmatpush1.bf16.xpose.msra.mxu0 0
        %1741 = vmatprep.subr.bf16.mxu0 0
        %1742 = vmatpush1.bf16.xpose.msra.mxu0 %v1725
        %1743 = vmatprep.subr.bf16.mxu0 0
        %1744 = vmatpush2.bf16.xpose.msra.mxu0 0
        %1745 = vmatprep.subr.bf16.mxu0 0
        %1746 = vmatpush2.bf16.xpose.msra.mxu0 0
        %1747 = vmatprep.subr.bf16.mxu0 0
        %1748 = vmatpush2.bf16.xpose.msra.mxu0 0
        %1749 = vmatprep.subr.bf16.mxu0 0
        %1750 = vmatpush2.bf16.xpose.msra.mxu0 0
        %1751 = vmatprep.subr.bf16.mxu0 0
        %1752 = vmatpush2.bf16.xpose.msra.mxu0 0
        %1753 = vmatprep.subr.bf16.mxu0 0
        %1754 = vmatpush2.bf16.xpose.msra.mxu0 0
        %1755 = vmatprep.subr.bf16.mxu0 0
        %1756 = vmatpush2.bf16.xpose.msra.mxu0 0
        %1757 = vmatprep.subr.bf16.mxu0 0
        %1758 = vmatpush2.bf16.xpose.msra.mxu0 0
        %1759 = vmatprep.mubr.bf16.mxu0 0
        %1760 = vmatmul.mubr.bf16.gmra.mxu0 %v1722
        %v1761 = vpop.f32.mrf.mxu0
        %v1762 = vadd.f32 %v1175, %v1761
        %v1763 = vpop.f32.mrf.mxu0
        %v1764 = vpop.f32.mrf.mxu0
        %v1765 = vpop.f32.mrf.mxu0
        %1766 = vdwg.mxu0
        %v1767 = vsel %vm1177, %v1762, -inf
        %1768 = vmax.xlane.f32.xlu0 %v1767
        %v1769 = vpop.xlane.xlu0 %1768
        %v1770 = vsub.f32 %v1762, %v1769
        %v1771 = vmul.f32 %v1770, 1.442695
        %v1772 = vpow.pop %v1771
        %v1773 = vsel %vm1177, %v1772, 0.0
        %1774 = vadd.xlane.f32.xlu0 %v1773
        %v1775 = vpop.xlane.xlu0 %1774
        %v1776 = vrcp.pop %v1775
        %v1777 = vmul.f32 %v1772, %v1776
        %v1778 = vpack.c.bf16 %v1777, %v1777
        %s1779 = scalar_lea.vmem [#allocation3], 12
        %v1780 = vld [vmem:[%s1779] sm:$0xf]
        %v1782 = vsel %vm1177, %v1778, 0
        %v1785 = vsel %vm1240, %v1780, 0
        %1787 = vmatprep.subr.bf16.mxu0 0
        %1788 = vmatpush1.bf16.msra.mxu0 0
        %1789 = vmatprep.subr.bf16.mxu0 0
        %1790 = vmatpush1.bf16.msra.mxu0 0
        %1791 = vmatprep.subr.bf16.mxu0 0
        %1792 = vmatpush1.bf16.msra.mxu0 0
        %1793 = vmatprep.subr.bf16.mxu0 0
        %1794 = vmatpush1.bf16.msra.mxu0 0
        %1795 = vmatprep.subr.bf16.mxu0 0
        %1796 = vmatpush1.bf16.msra.mxu0 0
        %1797 = vmatprep.subr.bf16.mxu0 0
        %1798 = vmatpush1.bf16.msra.mxu0 0
        %1799 = vmatprep.subr.bf16.mxu0 0
        %1800 = vmatpush1.bf16.msra.mxu0 0
        %1801 = vmatprep.subr.bf16.mxu0 0
        %1802 = vmatpush1.bf16.msra.mxu0 %v1785
        %1803 = vmatprep.subr.bf16.mxu0 0
        %1804 = vmatpush2.bf16.msra.mxu0 0
        %1805 = vmatprep.subr.bf16.mxu0 0
        %1806 = vmatpush2.bf16.msra.mxu0 0
        %1807 = vmatprep.subr.bf16.mxu0 0
        %1808 = vmatpush2.bf16.msra.mxu0 0
        %1809 = vmatprep.subr.bf16.mxu0 0
        %1810 = vmatpush2.bf16.msra.mxu0 0
        %1811 = vmatprep.subr.bf16.mxu0 0
        %1812 = vmatpush2.bf16.msra.mxu0 0
        %1813 = vmatprep.subr.bf16.mxu0 0
        %1814 = vmatpush2.bf16.msra.mxu0 0
        %1815 = vmatprep.subr.bf16.mxu0 0
        %1816 = vmatpush2.bf16.msra.mxu0 0
        %1817 = vmatprep.subr.bf16.mxu0 0
        %1818 = vmatpush2.bf16.msra.mxu0 0
        %1819 = vmatprep.mubr.bf16.mxu0 0
        %1820 = vmatmul.mubr.bf16.gmra.mxu0 %v1782
        %v1821 = vpop.f32.mrf.mxu0
        %v1822 = vadd.f32 0.0, %v1821
        %v1823 = vpop.f32.mrf.mxu0
        %v1824 = vpop.f32.mrf.mxu0
        %v1825 = vpop.f32.mrf.mxu0
        %1826 = vdwg.mxu0
        %v1827 = vpack.c.bf16 %v1822, %v1822
        %v1829 = vunpack.c.l.b16 %v1827
        %v1830 = vpack.c.b16 %v1829, %v1829
        %1831 = vrot.lane.b32.xlu0 %v1830, 24
        %v1832 = vpop.permute.xlu0 %1831
        %vm1834 = vcmask 257216
        %1835 = vst.msk [vmem:[#allocation4] sm:$0xf] %vm1834, %v1832
        %v1836 = vld [vmem:[#allocation4] sm:$0xf]
        %v1837 = vld [vmem:[%s8] sm:$0xf]
        %v1838 = vld [vmem:[%s8 + $0x4] sm:$0xf]
        %v1839 = vld [vmem:[%s8 + $0x8] sm:$0xf]
        %v1840 = vld [vmem:[%s8 + $0xc] sm:$0xf]
        %v1841 = vld [vmem:[%s9] sm:$0x1]
        %v1843 = vlaneseq
        %v1844 = vshrl.u32 %v1843, 7
        %v1845 = vsub.s32 0, %v1844
        %v1846 = vrot.slane %v1841, %v1845
        %v1852 = vunpack.c.l.b16 %v1837
        %v1853 = vunpack.c.l.b16 %v1838
        %v1854 = vunpack.c.l.b16 %v1839
        %v1855 = vunpack.c.l.b16 %v1840
        %v1856 = vpack.c.b16 %v1853, %v1852
        %v1857 = vpack.c.b16 %v1855, %v1854
        %v1861 = vsel %vm1125, %v1836, 0
        %1863 = vmatprep.subr.bf16.mxu0 0
        %1864 = vmatpush1.bf16.msra.mxu0 0
        %1865 = vmatprep.subr.bf16.mxu0 0
        %1866 = vmatpush1.bf16.msra.mxu0 0
        %1867 = vmatprep.subr.bf16.mxu0 0
        %1868 = vmatpush1.bf16.msra.mxu0 0
        %1869 = vmatprep.subr.bf16.mxu0 0
        %1870 = vmatpush1.bf16.msra.mxu0 0
        %1871 = vmatprep.subr.bf16.mxu0 0
        %1872 = vmatpush1.bf16.msra.mxu0 0
        %1873 = vmatprep.subr.bf16.mxu0 0
        %1874 = vmatpush1.bf16.msra.mxu0 0
        %1875 = vmatprep.subr.bf16.mxu0 0
        %1876 = vmatpush1.bf16.msra.mxu0 %v1857
        %1877 = vmatprep.subr.bf16.mxu0 0
        %1878 = vmatpush1.bf16.msra.mxu0 %v1856
        %1879 = vmatprep.subr.bf16.mxu0 0
        %1880 = vmatpush2.bf16.msra.mxu0 0
        %1881 = vmatprep.subr.bf16.mxu0 0
        %1882 = vmatpush2.bf16.msra.mxu0 0
        %1883 = vmatprep.subr.bf16.mxu0 0
        %1884 = vmatpush2.bf16.msra.mxu0 0
        %1885 = vmatprep.subr.bf16.mxu0 0
        %1886 = vmatpush2.bf16.msra.mxu0 0
        %1887 = vmatprep.subr.bf16.mxu0 0
        %1888 = vmatpush2.bf16.msra.mxu0 0
        %1889 = vmatprep.subr.bf16.mxu0 0
        %1890 = vmatpush2.bf16.msra.mxu0 0
        %1891 = vmatprep.subr.bf16.mxu0 0
        %1892 = vmatpush2.bf16.msra.mxu0 0
        %1893 = vmatprep.subr.bf16.mxu0 0
        %1894 = vmatpush2.bf16.msra.mxu0 0
        %1895 = vmatprep.mubr.bf16.mxu0 0
        %1896 = vmatmul.mubr.bf16.gmra.mxu0 %v1861
        %v1897 = vpop.f32.mrf.mxu0
        %v1898 = vadd.f32 %v1846, %v1897
        %v1899 = vpop.f32.mrf.mxu0
        %v1900 = vpop.f32.mrf.mxu0
        %v1901 = vpop.f32.mrf.mxu0
        %1902 = vdwg.mxu0
        %v1903 = vld [vmem:[%s10] sm:$0x1]
        %v1904 = vld [vmem:[%s11] sm:$0x1]
        %v1905 = vadd.f32 %v1898, %v1097
        %v1906 = vsel %vm1125, %v1905, 0.0
        %1907 = vadd.xlane.f32.xlu0 %v1906
        %v1908 = vpop.xlane.xlu0 %1907
        %v1909 = vrcp.pop 32.0
        %v1910 = vmul.f32 %v1908, %v1909
        %v1911 = vsub.f32 %v1905, %v1910
        %v1912 = vmul.f32 %v1911, %v1911
        %v1913 = vsel %vm1125, %v1912, 0.0
        %1914 = vadd.xlane.f32.xlu0 %v1913
        %v1915 = vpop.xlane.xlu0 %1914
        %v1916 = vmul.f32 %v1915, %v1909
        %v1917 = vadd.f32 %v1916, 1e-05
        %v1918 = vrsqrt.pop %v1917
        %v1919 = vmul.f32 %v1911, %v1918
        %v1921 = vlaneseq
        %v1922 = vshrl.u32 %v1921, 7
        %v1923 = vsub.s32 0, %v1922
        %v1924 = vrot.slane %v1903, %v1923
        %v1926 = vmul.f32 %v1919, %v1924
        %v1928 = vlaneseq
        %v1929 = vshrl.u32 %v1928, 7
        %v1930 = vsub.s32 0, %v1929
        %v1931 = vrot.slane %v1904, %v1930
        %v1933 = vadd.f32 %v1926, %v1931
        %v1934 = vpack.c.bf16 %v1933, %v1933
        %v1935 = vld [vmem:[%s12] sm:$0xf]
        %v1936 = vld [vmem:[%s12 + $0x4] sm:$0xf]
        %v1937 = vld [vmem:[%s12 + $0x8] sm:$0xf]
        %v1938 = vld [vmem:[%s12 + $0xc] sm:$0xf]
        %v1939 = vld [vmem:[%s13] sm:$0x1]
        %v1941 = vlaneseq
        %v1942 = vshrl.u32 %v1941, 7
        %v1943 = vsub.s32 0, %v1942
        %v1944 = vrot.slane %v1939, %v1943
        %v1950 = vunpack.c.l.b16 %v1935
        %v1951 = vunpack.c.l.b16 %v1936
        %v1952 = vunpack.c.l.b16 %v1937
        %v1953 = vunpack.c.l.b16 %v1938
        %v1954 = vpack.c.b16 %v1951, %v1950
        %v1955 = vpack.c.b16 %v1953, %v1952
        %v1959 = vsel %vm1125, %v1934, 0
        %1961 = vmatprep.subr.bf16.mxu0 0
        %1962 = vmatpush1.bf16.msra.mxu0 0
        %1963 = vmatprep.subr.bf16.mxu0 0
        %1964 = vmatpush1.bf16.msra.mxu0 0
        %1965 = vmatprep.subr.bf16.mxu0 0
        %1966 = vmatpush1.bf16.msra.mxu0 0
        %1967 = vmatprep.subr.bf16.mxu0 0
        %1968 = vmatpush1.bf16.msra.mxu0 0
        %1969 = vmatprep.subr.bf16.mxu0 0
        %1970 = vmatpush1.bf16.msra.mxu0 0
        %1971 = vmatprep.subr.bf16.mxu0 0
        %1972 = vmatpush1.bf16.msra.mxu0 0
        %1973 = vmatprep.subr.bf16.mxu0 0
        %1974 = vmatpush1.bf16.msra.mxu0 %v1955
        %1975 = vmatprep.subr.bf16.mxu0 0
        %1976 = vmatpush1.bf16.msra.mxu0 %v1954
        %1977 = vmatprep.subr.bf16.mxu0 0
        %1978 = vmatpush2.bf16.msra.mxu0 0
        %1979 = vmatprep.subr.bf16.mxu0 0
        %1980 = vmatpush2.bf16.msra.mxu0 0
        %1981 = vmatprep.subr.bf16.mxu0 0
        %1982 = vmatpush2.bf16.msra.mxu0 0
        %1983 = vmatprep.subr.bf16.mxu0 0
        %1984 = vmatpush2.bf16.msra.mxu0 0
        %1985 = vmatprep.subr.bf16.mxu0 0
        %1986 = vmatpush2.bf16.msra.mxu0 0
        %1987 = vmatprep.subr.bf16.mxu0 0
        %1988 = vmatpush2.bf16.msra.mxu0 0
        %1989 = vmatprep.subr.bf16.mxu0 0
        %1990 = vmatpush2.bf16.msra.mxu0 0
        %1991 = vmatprep.subr.bf16.mxu0 0
        %1992 = vmatpush2.bf16.msra.mxu0 0
        %1993 = vmatprep.mubr.bf16.mxu0 0
        %1994 = vmatmul.mubr.bf16.gmra.mxu0 %v1959
        %v1995 = vpop.f32.mrf.mxu0
        %v1996 = vadd.f32 %v1944, %v1995
        %v1997 = vpop.f32.mrf.mxu0
        %v1998 = vpop.f32.mrf.mxu0
        %v1999 = vpop.f32.mrf.mxu0
        %2000 = vdwg.mxu0
        %v2001 = vmul.f32 %v1996, 0.5
        %v2002 = vmul.f32 %v1996, 0.044715
        %v2003 = vmul.f32 %v2002, %v1996
        %v2004 = vmul.f32 %v2003, %v1996
        %v2005 = vadd.f32 %v1996, %v2004
        %v2006 = vmul.f32 %v2005, 0.7978846
        %v2007 = vtanh.pop %v2006
        %v2008 = vadd.f32 %v2007, 1.0
        %v2009 = vmul.f32 %v2001, %v2008
        %v2010 = vpack.c.bf16 %v2009, %v2009
        %v2011 = vld [vmem:[%s14] sm:$0xf]
        %v2012 = vld [vmem:[%s14 + $0x4] sm:$0xf]
        %v2013 = vld [vmem:[%s14 + $0x8] sm:$0xf]
        %v2014 = vld [vmem:[%s14 + $0xc] sm:$0xf]
        %v2015 = vld [vmem:[%s14 + $0x10] sm:$0xf]
        %v2016 = vld [vmem:[%s14 + $0x14] sm:$0xf]
        %v2017 = vld [vmem:[%s14 + $0x18] sm:$0xf]
        %v2018 = vld [vmem:[%s14 + $0x1c] sm:$0xf]
        %v2019 = vld [vmem:[%s14 + $0x20] sm:$0xf]
        %v2020 = vld [vmem:[%s14 + $0x24] sm:$0xf]
        %v2021 = vld [vmem:[%s14 + $0x28] sm:$0xf]
        %v2022 = vld [vmem:[%s14 + $0x2c] sm:$0xf]
        %v2023 = vld [vmem:[%s14 + $0x30] sm:$0xf]
        %v2024 = vld [vmem:[%s14 + $0x34] sm:$0xf]
        %v2025 = vld [vmem:[%s14 + $0x38] sm:$0xf]
        %v2026 = vld [vmem:[%s14 + $0x3c] sm:$0xf]
        %v2027 = vld [vmem:[%s15] sm:$0x1]
        %v2029 = vlaneseq
        %v2030 = vshrl.u32 %v2029, 7
        %v2031 = vsub.s32 0, %v2030
        %v2032 = vrot.slane %v2027, %v2031
        %v2050 = vunpack.c.l.b16 %v2011
        %v2051 = vunpack.c.l.b16 %v2012
        %v2052 = vunpack.c.l.b16 %v2013
        %v2053 = vunpack.c.l.b16 %v2014
        %v2054 = vunpack.c.l.b16 %v2015
        %v2055 = vunpack.c.l.b16 %v2016
        %v2056 = vunpack.c.l.b16 %v2017
        %v2057 = vunpack.c.l.b16 %v2018
        %v2058 = vunpack.c.l.b16 %v2019
        %v2059 = vunpack.c.l.b16 %v2020
        %v2060 = vunpack.c.l.b16 %v2021
        %v2061 = vunpack.c.l.b16 %v2022
        %v2062 = vunpack.c.l.b16 %v2023
        %v2063 = vunpack.c.l.b16 %v2024
        %v2064 = vunpack.c.l.b16 %v2025
        %v2065 = vunpack.c.l.b16 %v2026
        %v2066 = vpack.c.b16 %v2051, %v2050
        %v2067 = vpack.c.b16 %v2053, %v2052
        %v2068 = vpack.c.b16 %v2055, %v2054
        %v2069 = vpack.c.b16 %v2057, %v2056
        %v2070 = vpack.c.b16 %v2059, %v2058
        %v2071 = vpack.c.b16 %v2061, %v2060
        %v2072 = vpack.c.b16 %v2063, %v2062
        %v2073 = vpack.c.b16 %v2065, %v2064
        %2082 = vmatprep.subr.bf16.mxu0 0
        %2083 = vmatpush1.bf16.msra.mxu0 %v2073
        %2084 = vmatprep.subr.bf16.mxu0 0
        %2085 = vmatpush1.bf16.msra.mxu0 %v2072
        %2086 = vmatprep.subr.bf16.mxu0 0
        %2087 = vmatpush1.bf16.msra.mxu0 %v2071
        %2088 = vmatprep.subr.bf16.mxu0 0
        %2089 = vmatpush1.bf16.msra.mxu0 %v2070
        %2090 = vmatprep.subr.bf16.mxu0 0
        %2091 = vmatpush1.bf16.msra.mxu0 %v2069
        %2092 = vmatprep.subr.bf16.mxu0 0
        %2093 = vmatpush1.bf16.msra.mxu0 %v2068
        %2094 = vmatprep.subr.bf16.mxu0 0
        %2095 = vmatpush1.bf16.msra.mxu0 %v2067
        %2096 = vmatprep.subr.bf16.mxu0 0
        %2097 = vmatpush1.bf16.msra.mxu0 %v2066
        %2098 = vmatprep.subr.bf16.mxu0 0
        %2099 = vmatpush2.bf16.msra.mxu0 0
        %2100 = vmatprep.subr.bf16.mxu0 0
        %2101 = vmatpush2.bf16.msra.mxu0 0
        %2102 = vmatprep.subr.bf16.mxu0 0
        %2103 = vmatpush2.bf16.msra.mxu0 0
        %2104 = vmatprep.subr.bf16.mxu0 0
        %2105 = vmatpush2.bf16.msra.mxu0 0
        %2106 = vmatprep.subr.bf16.mxu0 0
        %2107 = vmatpush2.bf16.msra.mxu0 0
        %2108 = vmatprep.subr.bf16.mxu0 0
        %2109 = vmatpush2.bf16.msra.mxu0 0
        %2110 = vmatprep.subr.bf16.mxu0 0
        %2111 = vmatpush2.bf16.msra.mxu0 0
        %2112 = vmatprep.subr.bf16.mxu0 0
        %2113 = vmatpush2.bf16.msra.mxu0 0
        %2114 = vmatprep.mubr.bf16.mxu0 0
        %2115 = vmatmul.mubr.bf16.gmra.mxu0 %v2010
        %v2116 = vpop.f32.mrf.mxu0
        %v2117 = vadd.f32 %v2032, %v2116
        %v2118 = vpop.f32.mrf.mxu0
        %v2119 = vpop.f32.mrf.mxu0
        %v2120 = vpop.f32.mrf.mxu0
        %2121 = vdwg.mxu0
        %v2122 = vadd.f32 %v2117, %v1933
        %v2123 = vsel %vm1125, %v2122, 0.0
        %2124 = vadd.xlane.f32.xlu0 %v2123
        %v2125 = vpop.xlane.xlu0 %2124
        %v2126 = vmul.f32 %v2125, %v1909
        %v2127 = vsub.f32 %v2122, %v2126
        %v2128 = vmul.f32 %v2127, %v2127
        %v2129 = vsel %vm1125, %v2128, 0.0
        %2130 = vadd.xlane.f32.xlu0 %v2129
        %v2131 = vpop.xlane.xlu0 %2130
        %v2132 = vmul.f32 %v2131, %v1909
        %v2133 = vadd.f32 %v2132, 1e-05
        %v2134 = vrsqrt.pop %v2133
        %v2135 = vmul.f32 %v2127, %v2134
        %v2136 = vmul.f32 %v2135, %v1924
        %v2137 = vadd.f32 %v2136, %v1931
        %2138 = vst.msk [vmem:[%s537] sm:$0xff] %vm1125, %v2137
        %s2139 = sand.u32 %s398, 1
        %s2140 = scalar_lea.sflag [#allocation6], %s2139
        %s2141 = sand.u32 %s398, 1
        %s2142 = smul.addr %s2141, 8
        %s2143 = scalar_lea.vmem [#allocation5], %s2142
        // Predicated region
        $region89: #{tpu_custom_call.1} parent=83 // pred_check
          %p2144 = pneg %p408
        $region90: #{tpu_custom_call.1} parent=83 // pred_check_branch
          %2146 = sbr.rel (%p2144) target = $region92
        $region91: #{tpu_custom_call.1} parent=83 // pred_region
          %s2148 = ssub.s32 128, 128
          %2149 = vsyncadd %s2140, %s2148
          %s2150 = sadd.s32 %s35, %s34
          %s2151 = smul.addr %s2150, 128
          %s2152 = scalar_lea.hbm %s16, %s2151
          %s2154 = sshll.u32 %s2143, 4
          %s2155 = int_to_ptr.vmem [resolvable:$true] %s2154
          %2157 = dma.vmem_to_hbm [thread:$0]  %s2155, 128, %s2152, %s2140
        $region92: #{tpu_custom_call.1} parent=83 // pred_fallthru
          _
      $region84: #{tpu_custom_call.1} parent=5 // pred_fallthru
        _
      %p2158 = scmp.le.s32.totalorder 2, %s25
      // Predicated region
      $region93: #{tpu_custom_call.1} parent=5 // pred_check
        %p2159 = pneg %p2158
      $region94: #{tpu_custom_call.1} parent=5 // pred_check_branch
        %2161 = sbr.rel (%p2159) target = $region96
      $region95: #{tpu_custom_call.1} parent=5 // pred_region
        %s2162 = ssub.s32 %s25, 2
        // Predicated region
        $region97: #{tpu_custom_call.1} parent=95 // pred_check
          %p2163 = pneg %p414
        $region98: #{tpu_custom_call.1} parent=95 // pred_check_branch
          %2165 = sbr.rel (%p2163) target = $region100
        $region99: #{tpu_custom_call.1} parent=95 // pred_region
          %s2166 = sand.u32 %s399, 1
          %s2167 = scalar_lea.sflag [#allocation6], %s2166
          %s2168 = sand.u32 %s399, 1
          %s2169 = smul.addr %s2168, 8
          %s2170 = scalar_lea.vmem [#allocation5], %s2169
          %2171 = dma.done %s2167, 128
        $region100: #{tpu_custom_call.1} parent=95 // pred_fallthru
          _
      $region96: #{tpu_custom_call.1} parent=5 // pred_fallthru
        _
    $region6: #{tpu_custom_call.1} parent=1 // loop_footer
      %s29 = sadd.s32 1, %s25
    $region7: #{tpu_custom_call.1} parent=1 // loop_footer_branch
      %24 = sbr.rel target = $region3
    $region8: #{tpu_custom_call.1} parent=1 // loop_exit
      _
    %2172 = vsyncpa [#allocation6], 1
    %s2173 = scalar_lea.sflag [#allocation6], 1
    %2174 = vsyncpa %s2173, 1

</llo_original>
